<compile_context>
chip_gen: v6e
topology: v6e:2x2x1
jax: 0.10.0
libtpu: 0.0.40
codegen_flags: <defaults>
</compile_context>

<pallas_src>
import math

import jax
import jax.numpy as jnp
from jax.experimental import pallas as pl
from jax.experimental.pallas import tpu as pltpu


def precompute_rope_params(block_size: int, n_embd: int, n_head: int):
    """JAX port of the PyTorch precompute_rope_params."""
    h = n_embd // n_head
    positions = jnp.arange(block_size, dtype=jnp.float32)
    thetas = 1.0 / 10000.0 ** (jnp.arange(0, h, 2, dtype=jnp.float32) / h)
    pos_thetas = jnp.outer(positions, thetas)                        # (T, h//2)
    pos_thetas = jnp.concatenate([pos_thetas, pos_thetas], axis=-1)  # (T, h)
    return jnp.sin(pos_thetas), jnp.cos(pos_thetas)


def _mha_kernel(x_ref, wq_ref, wk_ref, wv_ref, wo_ref, sin_ref, cos_ref,
                o_ref, acc_ref):
    """One grid point = (batch b, head h): compute head h's attention and
    accumulate its contribution to the output projection."""
    h = pl.program_id(1)
    n_head = pl.num_programs(1)
    head_dim = wq_ref.shape[1]
    half = head_dim // 2
    scale = 1.0 / math.sqrt(head_dim)

    @pl.when(h == 0)
    def _():
        acc_ref[...] = jnp.zeros_like(acc_ref)

    x = x_ref[0]                          # (T, C) bf16 -- fed to the MXU as-is
    sin = sin_ref[...]                    # (T, hd) f32, rotate_half sign folded in
    cos = cos_ref[...]

    # Per-head QKV projections: bf16 x bf16 -> f32 on the MXU.
    q = jnp.dot(x, wq_ref[...], preferred_element_type=jnp.float32)   # (T, hd)
    k = jnp.dot(x, wk_ref[...], preferred_element_type=jnp.float32)
    v = jnp.dot(x, wv_ref[...],
                preferred_element_type=jnp.float32).astype(jnp.bfloat16)

    # RoPE: x*cos + rotate_half(x)*sin.  rotate_half = roll by half (XLU);
    # the [-x2, x1] sign is pre-folded into `sin` by the wrapper.
    q = q * cos + pltpu.roll(q, half, 1) * sin
    k = k * cos + pltpu.roll(k, half, 1) * sin
    q = (q * scale).astype(jnp.bfloat16)   # fold 1/sqrt(head_dim) into q once
    k = k.astype(jnp.bfloat16)

    # scores = q @ k^T without materializing a transpose.
    scores = jax.lax.dot_general(q, k, (((1,), (1,)), ((), ())),
                                 preferred_element_type=jnp.float32)  # (T, T)

    T = scores.shape[0]
    row = jax.lax.broadcasted_iota(jnp.int32, (T, T), 0)
    col = jax.lax.broadcasted_iota(jnp.int32, (T, T), 1)
    scores = jnp.where(col <= row, scores, -1e30)   # finite mask (NaN-safe)

    scores = scores - jnp.max(scores, axis=-1, keepdims=True)
    p = jnp.exp(scores)
    inv = pl.reciprocal(jnp.sum(p, axis=-1, keepdims=True), approx=True)
    p = (p * inv).astype(jnp.bfloat16)

    head_out = jnp.dot(p, v, preferred_element_type=jnp.float32)      # (T, hd)

    # Accumulate this head's slice of the output projection: acc += ho @ wo_h.
    acc_ref[...] += jnp.dot(head_out.astype(jnp.bfloat16), wo_ref[...],
                            preferred_element_type=jnp.float32)

    @pl.when(h == n_head - 1)
    def _():
        o_ref[0] = acc_ref[...].astype(o_ref.dtype)


def mha_forward(x, wq, wk, wv, wo, sin, cos, n_head):
    """x: (B,T,C) bf16. wq/wk/wv/wo: (C,C) bf16 nn.Linear weights (out, in)."""
    B, T, C = x.shape
    head_dim = C // n_head
    half = head_dim // 2

    sin_t = sin[:T]
    cos_t = cos[:T]
    # Fold the rotate_half sign ([-x2, x1]) into sin: kernel only needs roll().
    sin_signed = jnp.concatenate([-sin_t[:, :half], sin_t[:, half:]], axis=-1)

    return pl.pallas_call(
        _mha_kernel,
        out_shape=jax.ShapeDtypeStruct((B, T, C), x.dtype),
        grid=(B, n_head),
        in_specs=[
            pl.BlockSpec((1, T, C), lambda b, h: (b, 0, 0)),       # x
            pl.BlockSpec((C, head_dim), lambda b, h: (0, h)),      # wq^T head slice
            pl.BlockSpec((C, head_dim), lambda b, h: (0, h)),      # wk^T head slice
            pl.BlockSpec((C, head_dim), lambda b, h: (0, h)),      # wv^T head slice
            pl.BlockSpec((head_dim, C), lambda b, h: (h, 0)),      # wo^T head slice
            pl.BlockSpec((T, head_dim), lambda b, h: (0, 0)),      # sin (signed)
            pl.BlockSpec((T, head_dim), lambda b, h: (0, 0)),      # cos
        ],
        out_specs=pl.BlockSpec((1, T, C), lambda b, h: (b, 0, 0)),
        scratch_shapes=[pltpu.VMEM((T, C), jnp.float32)],
        compiler_params=pltpu.CompilerParams(
            dimension_semantics=("parallel", "arbitrary")),
    )(x, wq.T, wk.T, wv.T, wo.T, sin_signed, cos_t)


def mha_reference(x, wq, wk, wv, wo, sin, cos, n_head):
    """Pure-JAX reference mirroring the PyTorch forward (f32 math)."""
    B, T, C = x.shape
    hd = C // n_head
    xf = x.astype(jnp.float32)

    def proj(w):
        y = xf @ w.T.astype(jnp.float32)
        return y.reshape(B, T, n_head, hd).transpose(0, 2, 1, 3)   # (B,n,T,hd)

    q, k, v = proj(wq), proj(wk), proj(wv)
    s, c = sin[:T], cos[:T]

    def rope(t):
        rot = jnp.concatenate([-t[..., hd // 2:], t[..., :hd // 2]], axis=-1)
        return t * c + rot * s

    q, k = rope(q), rope(k)
    scores = (q @ jnp.swapaxes(k, -1, -2)) / math.sqrt(hd)
    mask = jnp.tril(jnp.ones((T, T), dtype=bool))
    scores = jnp.where(mask, scores, -jnp.inf)
    p = jax.nn.softmax(scores, axis=-1)
    out = (p @ v).transpose(0, 2, 1, 3).reshape(B, T, C)
    return out @ wo.T.astype(jnp.float32)


if __name__ == "__main__":
    # Small config consistent with the module: head_dim=128 (like Llama2),
    # tile-aligned T and C for the MXU/vreg layout.
    B, T = 2, 128
    n_embd, n_head, block_size = 256, 2, 128

    key = jax.random.PRNGKey(0)
    kx, kq, kk, kv, ko = jax.random.split(key, 5)
    bound = 1.0 / math.sqrt(n_embd)

    x = jax.random.normal(kx, (B, T, n_embd), dtype=jnp.float32).astype(jnp.bfloat16)
    wq = jax.random.uniform(kq, (n_embd, n_embd), minval=-bound, maxval=bound).astype(jnp.bfloat16)
    wk = jax.random.uniform(kk, (n_embd, n_embd), minval=-bound, maxval=bound).astype(jnp.bfloat16)
    wv = jax.random.uniform(kv, (n_embd, n_embd), minval=-bound, maxval=bound).astype(jnp.bfloat16)
    wo = jax.random.uniform(ko, (n_embd, n_embd), minval=-bound, maxval=bound).astype(jnp.bfloat16)

    sin, cos = precompute_rope_params(block_size, n_embd, n_head)

    out = jax.block_until_ready(mha_forward(x, wq, wk, wv, wo, sin, cos, n_head))

    assert out.shape == (B, T, n_embd), out.shape
    assert out.dtype == jnp.bfloat16, out.dtype

    ref = mha_reference(x, wq, wk, wv, wo, sin, cos, n_head)
    max_err = float(jnp.max(jnp.abs(out.astype(jnp.float32) - ref)))
    assert max_err < 0.1, f"max abs error {max_err} too large"

    print("KERNEL_OK")
</pallas_src>

<mosaic_0001>
module attributes {stable_mosaic.version = 11 : i64} {
  func.func @_mha_kernel(%arg0: i32, %arg1: i32, %arg2: memref<1x128x256xbf16, #tpu.memory_space<vmem>>, %arg3: memref<256x128xbf16, #tpu.memory_space<vmem>>, %arg4: memref<256x128xbf16, #tpu.memory_space<vmem>>, %arg5: memref<256x128xbf16, #tpu.memory_space<vmem>>, %arg6: memref<128x256xbf16, #tpu.memory_space<vmem>>, %arg7: memref<128x128xf32, #tpu.memory_space<vmem>>, %arg8: memref<128x128xf32, #tpu.memory_space<vmem>>, %arg9: memref<1x128x256xbf16, #tpu.memory_space<vmem>>, %arg10: memref<128x256xf32, #tpu.memory_space<vmem>>) attributes {dimension_semantics = [#tpu.dimension_semantics<parallel>, #tpu.dimension_semantics<arbitrary>], iteration_bounds = array<i64: 2, 2>, scalar_prefetch = 0 : i64, scratch_operands = 1 : i64, tpu.core_type = #tpu.core_type<tc>, window_params = [{transform_indices = @transform_0, window_bounds = array<i64: 1, 128, 256>}, {transform_indices = @transform_1, window_bounds = array<i64: 256, 128>}, {transform_indices = @transform_2, window_bounds = array<i64: 256, 128>}, {transform_indices = @transform_3, window_bounds = array<i64: 256, 128>}, {transform_indices = @transform_4, window_bounds = array<i64: 128, 256>}, {pipeline_mode = #tpu.pipeline_mode<synchronous>, transform_indices = @transform_5, window_bounds = array<i64: 128, 128>}, {pipeline_mode = #tpu.pipeline_mode<synchronous>, transform_indices = @transform_6, window_bounds = array<i64: 128, 128>}, {transform_indices = @transform_7, window_bounds = array<i64: 1, 128, 256>}]} {
    %c0_i32 = arith.constant 0 : i32
    %0 = arith.cmpi eq, %arg1, %c0_i32 : i32
    %1 = arith.extui %0 : i1 to i32
    %c0_i32_0 = arith.constant 0 : i32
    %2 = arith.cmpi ne, %1, %c0_i32_0 : i32
    scf.if %2 {
      %cst_30 = arith.constant 0.000000e+00 : f32
      %53 = vector.broadcast %cst_30 : f32 to vector<128x256xf32>
      %c0_31 = arith.constant 0 : index
      %c0_32 = arith.constant 0 : index
      %54 = vector.load %arg10[%c0_31, %c0_32] : memref<128x256xf32, #tpu.memory_space<vmem>>, vector<128x256xf32>
      tpu.vector_store %arg10[%c0_31, %c0_32], %53 {strides = array<i32>} : memref<128x256xf32, #tpu.memory_space<vmem>>, vector<128x256xf32>,
    } else {
    }
    %c0 = arith.constant 0 : index
    %c0_1 = arith.constant 0 : index
    %c0_2 = arith.constant 0 : index
    %3 = vector.load %arg2[%c0, %c0_1, %c0_2] : memref<1x128x256xbf16, #tpu.memory_space<vmem>>, vector<1x128x256xbf16>
    %4 = vector.shape_cast %3 : vector<1x128x256xbf16> to vector<128x256xbf16>
    %c0_3 = arith.constant 0 : index
    %c0_4 = arith.constant 0 : index
    %5 = vector.load %arg7[%c0_3, %c0_4] : memref<128x128xf32, #tpu.memory_space<vmem>>, vector<128x128xf32>
    %c0_5 = arith.constant 0 : index
    %c0_6 = arith.constant 0 : index
    %6 = vector.load %arg8[%c0_5, %c0_6] : memref<128x128xf32, #tpu.memory_space<vmem>>, vector<128x128xf32>
    %c0_7 = arith.constant 0 : index
    %c0_8 = arith.constant 0 : index
    %7 = vector.load %arg3[%c0_7, %c0_8] : memref<256x128xbf16, #tpu.memory_space<vmem>>, vector<256x128xbf16>
    %cst = arith.constant dense<0.000000e+00> : vector<128x128xf32>
    %8 = tpu.matmul %4, %7, %cst {dimension_numbers = #tpu.dot_dimension_numbers<[1], [0], [0], [1], [0, 0, 1, 1], [], []>} : vector<128x256xbf16>, vector<256x128xbf16>, vector<128x128xf32> -> vector<128x128xf32>
    %c0_9 = arith.constant 0 : index
    %c0_10 = arith.constant 0 : index
    %9 = vector.load %arg4[%c0_9, %c0_10] : memref<256x128xbf16, #tpu.memory_space<vmem>>, vector<256x128xbf16>
    %cst_11 = arith.constant dense<0.000000e+00> : vector<128x128xf32>
    %10 = tpu.matmul %4, %9, %cst_11 {dimension_numbers = #tpu.dot_dimension_numbers<[1], [0], [0], [1], [0, 0, 1, 1], [], []>} : vector<128x256xbf16>, vector<256x128xbf16>, vector<128x128xf32> -> vector<128x128xf32>
    %c0_12 = arith.constant 0 : index
    %c0_13 = arith.constant 0 : index
    %11 = vector.load %arg5[%c0_12, %c0_13] : memref<256x128xbf16, #tpu.memory_space<vmem>>, vector<256x128xbf16>
    %cst_14 = arith.constant dense<0.000000e+00> : vector<128x128xf32>
    %12 = tpu.matmul %4, %11, %cst_14 {dimension_numbers = #tpu.dot_dimension_numbers<[1], [0], [0], [1], [0, 0, 1, 1], [], []>} : vector<128x256xbf16>, vector<256x128xbf16>, vector<128x128xf32> -> vector<128x128xf32>
    %13 = arith.truncf %12 : vector<128x128xf32> to vector<128x128xbf16>
    %14 = arith.mulf %8, %6 : vector<128x128xf32>
    %c64_i32 = arith.constant 64 : i32
    %15 = tpu.dynamic_rotate %8 by %c64_i32 dim 1 : vector<128x128xf32>, i32 -> vector<128x128xf32>
    %16 = arith.mulf %15, %5 : vector<128x128xf32>
    %17 = arith.addf %14, %16 : vector<128x128xf32>
    %18 = arith.mulf %10, %6 : vector<128x128xf32>
    %c64_i32_15 = arith.constant 64 : i32
    %19 = tpu.dynamic_rotate %10 by %c64_i32_15 dim 1 : vector<128x128xf32>, i32 -> vector<128x128xf32>
    %20 = arith.mulf %19, %5 : vector<128x128xf32>
    %21 = arith.addf %18, %20 : vector<128x128xf32>
    %cst_16 = arith.constant 0.0883883461 : f32
    %22 = vector.broadcast %cst_16 : f32 to vector<128x128xf32>
    %23 = arith.mulf %17, %22 : vector<128x128xf32>
    %24 = arith.truncf %23 : vector<128x128xf32> to vector<128x128xbf16>
    %25 = arith.truncf %21 : vector<128x128xf32> to vector<128x128xbf16>
    %cst_17 = arith.constant dense<0.000000e+00> : vector<128x128xf32>
    %26 = tpu.matmul %24, %25, %cst_17 {dimension_numbers = #tpu.dot_dimension_numbers<[1], [1], [0], [0], [0, 0, 1, 0], [], []>} : vector<128x128xbf16>, vector<128x128xbf16>, vector<128x128xf32> -> vector<128x128xf32>
    %27 = tpu.iota {dimensions = array<i32: 0>} : vector<128x128xi32>
    %28 = tpu.iota {dimensions = array<i32: 1>} : vector<128x128xi32>
    %29 = arith.cmpi sle, %28, %27 : vector<128x128xi32>
    %cst_18 = arith.constant -1.000000e+30 : f32
    %30 = vector.broadcast %cst_18 : f32 to vector<128x128xf32>
    %31 = arith.select %29, %26, %30 : vector<128x128xi1>, vector<128x128xf32>
    %cst_19 = arith.constant dense<0xFF800000> : vector<128xf32>
    %32 = vector.multi_reduction <maximumf>, %31, %cst_19 [1] : vector<128x128xf32> to vector<128xf32>
    %33 = vector.shape_cast %32 : vector<128xf32> to vector<128x1xf32>
    %34 = vector.broadcast %33 : vector<128x1xf32> to vector<128x128xf32>
    %35 = arith.subf %31, %34 : vector<128x128xf32>
    %36 = math.exp %35 : vector<128x128xf32>
    %cst_20 = arith.constant dense<0.000000e+00> : vector<128xf32>
    %37 = vector.multi_reduction <add>, %36, %cst_20 [1] : vector<128x128xf32> to vector<128xf32>
    %38 = vector.shape_cast %37 : vector<128xf32> to vector<128x1xf32>
    %39 = tpu.reciprocal %38 {approx = true} : vector<128x1xf32> -> vector<128x1xf32>
    %40 = vector.broadcast %39 : vector<128x1xf32> to vector<128x128xf32>
    %41 = arith.mulf %36, %40 : vector<128x128xf32>
    %42 = arith.truncf %41 : vector<128x128xf32> to vector<128x128xbf16>
    %cst_21 = arith.constant dense<0.000000e+00> : vector<128x128xf32>
    %43 = tpu.matmul %42, %13, %cst_21 {dimension_numbers = #tpu.dot_dimension_numbers<[1], [0], [0], [1], [0, 0, 1, 1], [], []>} : vector<128x128xbf16>, vector<128x128xbf16>, vector<128x128xf32> -> vector<128x128xf32>
    %c0_22 = arith.constant 0 : index
    %c0_23 = arith.constant 0 : index
    %44 = vector.load %arg10[%c0_22, %c0_23] : memref<128x256xf32, #tpu.memory_space<vmem>>, vector<128x256xf32>
    %45 = arith.truncf %43 : vector<128x128xf32> to vector<128x128xbf16>
    %c0_24 = arith.constant 0 : index
    %c0_25 = arith.constant 0 : index
    %46 = vector.load %arg6[%c0_24, %c0_25] : memref<128x256xbf16, #tpu.memory_space<vmem>>, vector<128x256xbf16>
    %cst_26 = arith.constant dense<0.000000e+00> : vector<128x256xf32>
    %47 = tpu.matmul %45, %46, %cst_26 {dimension_numbers = #tpu.dot_dimension_numbers<[1], [0], [0], [1], [0, 0, 1, 1], [], []>} : vector<128x128xbf16>, vector<128x256xbf16>, vector<128x256xf32> -> vector<128x256xf32>
    %48 = arith.addf %44, %47 : vector<128x256xf32>
    %c0_27 = arith.constant 0 : index
    %c0_28 = arith.constant 0 : index
    %49 = vector.load %arg10[%c0_27, %c0_28] : memref<128x256xf32, #tpu.memory_space<vmem>>, vector<128x256xf32>
    tpu.vector_store %arg10[%c0_27, %c0_28], %48 {strides = array<i32>} : memref<128x256xf32, #tpu.memory_space<vmem>>, vector<128x256xf32>,
    %c1_i32 = arith.constant 1 : i32
    %50 = arith.cmpi eq, %arg1, %c1_i32 : i32
    %51 = arith.extui %50 : i1 to i32
    %c0_i32_29 = arith.constant 0 : i32
    %52 = arith.cmpi ne, %51, %c0_i32_29 : i32
    scf.if %52 {
      %c0_30 = arith.constant 0 : index
      %c0_31 = arith.constant 0 : index
      %53 = vector.load %arg10[%c0_30, %c0_31] : memref<128x256xf32, #tpu.memory_space<vmem>>, vector<128x256xf32>
      %54 = arith.truncf %53 : vector<128x256xf32> to vector<128x256xbf16>
      %c0_32 = arith.constant 0 : index
      %c0_33 = arith.constant 0 : index
      %c0_34 = arith.constant 0 : index
      %55 = vector.load %arg9[%c0_32, %c0_33, %c0_34] : memref<1x128x256xbf16, #tpu.memory_space<vmem>>, vector<1x128x256xbf16>
      %56 = vector.shape_cast %55 : vector<1x128x256xbf16> to vector<128x256xbf16>
      %57 = vector.shape_cast %54 : vector<128x256xbf16> to vector<1x128x256xbf16>
      tpu.vector_store %arg9[%c0_32, %c0_33, %c0_34], %57 {strides = array<i32>} : memref<1x128x256xbf16, #tpu.memory_space<vmem>>, vector<1x128x256xbf16>,
    } else {
    }
    return
  }
  func.func @transform_0(%arg0: i32, %arg1: i32) -> (i32, i32, i32) {
    %c0_i32 = arith.constant 0 : i32
    %c0_i32_0 = arith.constant 0 : i32
    %c0_i32_1 = arith.constant 0 : i32
    return %arg0, %c0_i32, %c0_i32_0 : i32, i32, i32
  }
  func.func @transform_1(%arg0: i32, %arg1: i32) -> (i32, i32) {
    %c0_i32 = arith.constant 0 : i32
    %c0_i32_0 = arith.constant 0 : i32
    return %c0_i32, %arg1 : i32, i32
  }
  func.func @transform_2(%arg0: i32, %arg1: i32) -> (i32, i32) {
    %c0_i32 = arith.constant 0 : i32
    %c0_i32_0 = arith.constant 0 : i32
    return %c0_i32, %arg1 : i32, i32
  }
  func.func @transform_3(%arg0: i32, %arg1: i32) -> (i32, i32) {
    %c0_i32 = arith.constant 0 : i32
    %c0_i32_0 = arith.constant 0 : i32
    return %c0_i32, %arg1 : i32, i32
  }
  func.func @transform_4(%arg0: i32, %arg1: i32) -> (i32, i32) {
    %c0_i32 = arith.constant 0 : i32
    %c0_i32_0 = arith.constant 0 : i32
    return %arg1, %c0_i32 : i32, i32
  }
  func.func @transform_5(%arg0: i32, %arg1: i32) -> (i32, i32) {
    %c0_i32 = arith.constant 0 : i32
    %c0_i32_0 = arith.constant 0 : i32
    %c0_i32_1 = arith.constant 0 : i32
    return %c0_i32, %c0_i32_0 : i32, i32
  }
  func.func @transform_6(%arg0: i32, %arg1: i32) -> (i32, i32) {
    %c0_i32 = arith.constant 0 : i32
    %c0_i32_0 = arith.constant 0 : i32
    %c0_i32_1 = arith.constant 0 : i32
    return %c0_i32, %c0_i32_0 : i32, i32
  }
  func.func @transform_7(%arg0: i32, %arg1: i32) -> (i32, i32, i32) {
    %c0_i32 = arith.constant 0 : i32
    %c0_i32_0 = arith.constant 0 : i32
    %c0_i32_1 = arith.constant 0 : i32
    return %arg0, %c0_i32, %c0_i32_0 : i32, i32, i32
  }
}

</mosaic_0001>

<llo_original>
// kernel: tpu_custom_call.1
$region0: #{tpu_custom_call.1}
  #allocation0 [shape = 'u32[]', space=smem, size = 0x4, offset = 0x4, fixed_abs, tag = 'smem constant byte address 0x4 - core index']
  #allocation1 [shape = 'u32[144,128]{1,0:T(1,128)}', space=vmem, size = 0x12000, scoped, tag = 'internal scratch']
  #allocation2 [shape = 'f32[128,256]{1,0:T(8,128)}', space=vmem, size = 0x20000, scoped, tag = 'scratch operand']
  %s0 = inlined_call_operand.hbm [shape: bf16[2,128,256], index: 0, kind: input, shape index: {}]
  %s1 = inlined_call_operand.hbm [shape: bf16[256,256], index: 1, kind: input, shape index: {}]
  %s2 = inlined_call_operand.hbm [shape: bf16[256,256], index: 2, kind: input, shape index: {}]
  %s3 = inlined_call_operand.hbm [shape: bf16[256,256], index: 3, kind: input, shape index: {}]
  %s4 = inlined_call_operand.hbm [shape: bf16[256,256], index: 4, kind: input, shape index: {}]
  %s5 = inlined_call_operand.hbm [shape: f32[128,128], index: 5, kind: input, shape index: {}]
  %s6 = inlined_call_operand.hbm [shape: f32[128,128], index: 6, kind: input, shape index: {}]
  %s7 = inlined_call_operand.hbm [shape: bf16[2,128,256], index: 7, kind: output, shape index: {}]
  %s8 = sld [smem:[#allocation0]]
  $region97: #{tpu_custom_call.1} parent=0
    _
  %s10 = ssub.s32 1, %s8
  %s11 = scalar_select 0, %s10, %s8
  $region1: #{tpu_custom_call.1} parent=0
    #allocation3 [shape = 'u8[131072]{0}', space=vmem, size = 0x20000, scoped, tag = 'input window, operand 0']
    #allocation4 [shape = 's32[2]{0}', space=sflag, size = 0x8, scoped, tag = 'scoped memory for tpu_custom_call.1']
    #allocation5 [shape = 's32[2]{0}', space=sflag, size = 0x8, scoped, tag = 'scoped memory for tpu_custom_call.1']
    #allocation6 [shape = 'u8[131072]{0}', space=vmem, size = 0x20000, scoped, tag = 'input window, operand 1']
    #allocation7 [shape = 's32[2]{0}', space=sflag, size = 0x8, scoped, tag = 'scoped memory for tpu_custom_call.1']
    #allocation8 [shape = 'u8[131072]{0}', space=vmem, size = 0x20000, scoped, tag = 'input window, operand 2']
    #allocation9 [shape = 'u8[131072]{0}', space=vmem, size = 0x20000, scoped, tag = 'input window, operand 3']
    #allocation10 [shape = 's32[2]{0}', space=sflag, size = 0x8, scoped, tag = 'scoped memory for tpu_custom_call.1']
    #allocation11 [shape = 'u8[131072]{0}', space=vmem, size = 0x20000, scoped, tag = 'input window, operand 4']
    #allocation12 [shape = 'u8[65536]{0}', space=vmem, size = 0x10000, scoped, tag = 'input window, operand 5, single buffered']
    #allocation13 [shape = 's32[1]{0}', space=sflag, size = 0x4, scoped, tag = 'scoped memory for tpu_custom_call.1']
    #allocation14 [shape = 'u8[65536]{0}', space=vmem, size = 0x10000, scoped, tag = 'input window, operand 6, single buffered']
    #allocation15 [shape = 'u8[131072]{0}', space=vmem, size = 0x20000, scoped, tag = 'output window, operand 0']
    %12 = vsyncpa [#allocation4], 0
    %s13 = scalar_lea.sflag [#allocation4], 1
    %14 = vsyncpa %s13, 0
    %15 = vsyncpa [#allocation7], 0
    %s16 = scalar_lea.sflag [#allocation7], 1
    %17 = vsyncpa %s16, 0
    %18 = vsyncpa [#allocation10], 0
    %s19 = scalar_lea.sflag [#allocation10], 1
    %20 = vsyncpa %s19, 0
    %21 = vsyncpa [#allocation13], 0
    %22 = vsyncpa [#allocation5], 0
    %s23 = scalar_lea.sflag [#allocation5], 1
    %24 = vsyncpa %s23, 0
    loop: start=0, step=1, limit=6
    $region2: #{tpu_custom_call.1} parent=1 // loop_pre_header
      _
    $region3: #{tpu_custom_call.1} parent=1 // loop_header
      %s26 = sphi 0, %s30
      %p27 = scmp.ge.s32.totalorder %s26, 6
      %s33 = sphi 0, %s45
      %s34 = sphi 0, %s41
      %s35 = sphi 0, %s33
      %s36 = sphi 0, %s34
      %s37 = sphi 0, %s35
      %s38 = sphi 0, %s36
      %s48 = sphi 0, %s50
      %s51 = sphi 0, %s48
      %s52 = sphi 0, %s51
      %s68 = sphi 0, %s52
      %s74 = sphi 0, %s76
      %s77 = sphi 0, %s74
      %s78 = sphi 0, %s77
      %s94 = sphi 0, %s78
      %s100 = sphi 0, %s102
      %s103 = sphi 0, %s100
      %s104 = sphi 0, %s103
      %s120 = sphi 0, %s104
      %s126 = sphi 0, %s128
      %s129 = sphi 0, %s126
      %s130 = sphi 0, %s129
      %s146 = sphi 0, %s130
      %s152 = sphi 0, %s154
      %s155 = sphi 0, %s152
      %s156 = sphi 0, %s155
      %s172 = sphi 0, %s156
      %s176 = sphi 0, %s176
      %s178 = sphi 0, %s176
      %s179 = sphi 0, %s178
      %s193 = sphi 0, %s179
      %s197 = sphi 0, %s197
      %s199 = sphi 0, %s197
      %s200 = sphi 0, %s199
      %s214 = sphi 0, %s200
      %s220 = sphi 0, %s222
      %s223 = sphi 0, %s220
      %s224 = sphi 0, %s223
      %s240 = sphi 0, %s224
    $region4: #{tpu_custom_call.1} parent=1 // loop_header_branch
      %29 = sbr.rel (%p27) target = $region8
    $region5: #{tpu_custom_call.1} parent=1 // loop_body
      %s31 = ssub.s32 %s26, 1
      %s32 = ssub.s32 %s26, 2
      %s39 = sadd.s32 1, %s34
      %p40 = scmp.ge.s32.totalorder %s39, 2
      %s41 = scalar_select %p40, 0, %s39
      %s42 = sadd.s32 1, %s33
      %s43 = scalar_select %p40, %s42, %s33
      %p44 = scmp.ge.s32.totalorder %s43, 2
      %s45 = scalar_select %p44, 0, %s43
      %s46 = ssub.s32 %s33, %s45
      %p47 = scmp.eq.s32.totalorder %s46, 0
      %s49 = sadd.s32 %s48, 1
      %s50 = scalar_select %p47, %s48, %s49
      %p53 = pneg %p47
      %p54 = scmp.eq.s32.totalorder %s26, 3
      %p55 = por %p53, %p54
      %p56 = scmp.ne.s32.totalorder %s48, %s51
      %p57 = scmp.eq.s32.totalorder %s26, 0
      %p58 = por %p56, %p57
      %p59 = scmp.ne.s32.totalorder %s48, %s51
      %p60 = scmp.eq.s32.totalorder %s31, 3
      %p61 = por %p59, %p60
      %p62 = scmp.ne.s32.totalorder %s51, %s52
      %p63 = scmp.eq.s32.totalorder %s31, 0
      %p64 = por %p62, %p63
      %p65 = scmp.ne.s32.totalorder %s51, %s52
      %p66 = scmp.eq.s32.totalorder %s32, 3
      %p67 = por %p65, %p66
      %p69 = scmp.ne.s32.totalorder %s52, %s68
      %p70 = scmp.eq.s32.totalorder %s32, 0
      %p71 = por %p69, %p70
      %s72 = ssub.s32 %s34, %s41
      %p73 = scmp.eq.s32.totalorder %s72, 0
      %s75 = sadd.s32 %s74, 1
      %s76 = scalar_select %p73, %s74, %s75
      %p79 = pneg %p73
      %p80 = scmp.eq.s32.totalorder %s26, 3
      %p81 = por %p79, %p80
      %p82 = scmp.ne.s32.totalorder %s74, %s77
      %p83 = scmp.eq.s32.totalorder %s26, 0
      %p84 = por %p82, %p83
      %p85 = scmp.ne.s32.totalorder %s74, %s77
      %p86 = scmp.eq.s32.totalorder %s31, 3
      %p87 = por %p85, %p86
      %p88 = scmp.ne.s32.totalorder %s77, %s78
      %p89 = scmp.eq.s32.totalorder %s31, 0
      %p90 = por %p88, %p89
      %p91 = scmp.ne.s32.totalorder %s77, %s78
      %p92 = scmp.eq.s32.totalorder %s32, 3
      %p93 = por %p91, %p92
      %p95 = scmp.ne.s32.totalorder %s78, %s94
      %p96 = scmp.eq.s32.totalorder %s32, 0
      %p97 = por %p95, %p96
      %s98 = ssub.s32 %s34, %s41
      %p99 = scmp.eq.s32.totalorder %s98, 0
      %s101 = sadd.s32 %s100, 1
      %s102 = scalar_select %p99, %s100, %s101
      %p105 = pneg %p99
      %p106 = scmp.eq.s32.totalorder %s26, 3
      %p107 = por %p105, %p106
      %p108 = scmp.ne.s32.totalorder %s100, %s103
      %p109 = scmp.eq.s32.totalorder %s26, 0
      %p110 = por %p108, %p109
      %p111 = scmp.ne.s32.totalorder %s100, %s103
      %p112 = scmp.eq.s32.totalorder %s31, 3
      %p113 = por %p111, %p112
      %p114 = scmp.ne.s32.totalorder %s103, %s104
      %p115 = scmp.eq.s32.totalorder %s31, 0
      %p116 = por %p114, %p115
      %p117 = scmp.ne.s32.totalorder %s103, %s104
      %p118 = scmp.eq.s32.totalorder %s32, 3
      %p119 = por %p117, %p118
      %p121 = scmp.ne.s32.totalorder %s104, %s120
      %p122 = scmp.eq.s32.totalorder %s32, 0
      %p123 = por %p121, %p122
      %s124 = ssub.s32 %s34, %s41
      %p125 = scmp.eq.s32.totalorder %s124, 0
      %s127 = sadd.s32 %s126, 1
      %s128 = scalar_select %p125, %s126, %s127
      %p131 = pneg %p125
      %p132 = scmp.eq.s32.totalorder %s26, 3
      %p133 = por %p131, %p132
      %p134 = scmp.ne.s32.totalorder %s126, %s129
      %p135 = scmp.eq.s32.totalorder %s26, 0
      %p136 = por %p134, %p135
      %p137 = scmp.ne.s32.totalorder %s126, %s129
      %p138 = scmp.eq.s32.totalorder %s31, 3
      %p139 = por %p137, %p138
      %p140 = scmp.ne.s32.totalorder %s129, %s130
      %p141 = scmp.eq.s32.totalorder %s31, 0
      %p142 = por %p140, %p141
      %p143 = scmp.ne.s32.totalorder %s129, %s130
      %p144 = scmp.eq.s32.totalorder %s32, 3
      %p145 = por %p143, %p144
      %p147 = scmp.ne.s32.totalorder %s130, %s146
      %p148 = scmp.eq.s32.totalorder %s32, 0
      %p149 = por %p147, %p148
      %s150 = ssub.s32 %s34, %s41
      %p151 = scmp.eq.s32.totalorder %s150, 0
      %s153 = sadd.s32 %s152, 1
      %s154 = scalar_select %p151, %s152, %s153
      %p157 = pneg %p151
      %p158 = scmp.eq.s32.totalorder %s26, 3
      %p159 = por %p157, %p158
      %p160 = scmp.ne.s32.totalorder %s152, %s155
      %p161 = scmp.eq.s32.totalorder %s26, 0
      %p162 = por %p160, %p161
      %p163 = scmp.ne.s32.totalorder %s152, %s155
      %p164 = scmp.eq.s32.totalorder %s31, 3
      %p165 = por %p163, %p164
      %p166 = scmp.ne.s32.totalorder %s155, %s156
      %p167 = scmp.eq.s32.totalorder %s31, 0
      %p168 = por %p166, %p167
      %p169 = scmp.ne.s32.totalorder %s155, %s156
      %p170 = scmp.eq.s32.totalorder %s32, 3
      %p171 = por %p169, %p170
      %p173 = scmp.ne.s32.totalorder %s156, %s172
      %p174 = scmp.eq.s32.totalorder %s32, 0
      %p175 = por %p173, %p174
      %s177 = sadd.s32 %s176, 1
      %p180 = scmp.eq.s32.totalorder %s26, 3
      %p181 = scmp.ne.s32.totalorder %s176, %s178
      %p182 = scmp.eq.s32.totalorder %s26, 0
      %p183 = por %p181, %p182
      %p184 = scmp.ne.s32.totalorder %s176, %s178
      %p185 = scmp.eq.s32.totalorder %s31, 3
      %p186 = por %p184, %p185
      %p187 = scmp.ne.s32.totalorder %s178, %s179
      %p188 = scmp.eq.s32.totalorder %s31, 0
      %p189 = por %p187, %p188
      %p190 = scmp.ne.s32.totalorder %s178, %s179
      %p191 = scmp.eq.s32.totalorder %s32, 3
      %p192 = por %p190, %p191
      %p194 = scmp.ne.s32.totalorder %s179, %s193
      %p195 = scmp.eq.s32.totalorder %s32, 0
      %p196 = por %p194, %p195
      %s198 = sadd.s32 %s197, 1
      %p201 = scmp.eq.s32.totalorder %s26, 3
      %p202 = scmp.ne.s32.totalorder %s197, %s199
      %p203 = scmp.eq.s32.totalorder %s26, 0
      %p204 = por %p202, %p203
      %p205 = scmp.ne.s32.totalorder %s197, %s199
      %p206 = scmp.eq.s32.totalorder %s31, 3
      %p207 = por %p205, %p206
      %p208 = scmp.ne.s32.totalorder %s199, %s200
      %p209 = scmp.eq.s32.totalorder %s31, 0
      %p210 = por %p208, %p209
      %p211 = scmp.ne.s32.totalorder %s199, %s200
      %p212 = scmp.eq.s32.totalorder %s32, 3
      %p213 = por %p211, %p212
      %p215 = scmp.ne.s32.totalorder %s200, %s214
      %p216 = scmp.eq.s32.totalorder %s32, 0
      %p217 = por %p215, %p216
      %s218 = ssub.s32 %s33, %s45
      %p219 = scmp.eq.s32.totalorder %s218, 0
      %s221 = sadd.s32 %s220, 1
      %s222 = scalar_select %p219, %s220, %s221
      %p225 = pneg %p219
      %p226 = scmp.eq.s32.totalorder %s26, 3
      %p227 = por %p225, %p226
      %p228 = scmp.ne.s32.totalorder %s220, %s223
      %p229 = scmp.eq.s32.totalorder %s26, 0
      %p230 = por %p228, %p229
      %p231 = scmp.ne.s32.totalorder %s220, %s223
      %p232 = scmp.eq.s32.totalorder %s31, 3
      %p233 = por %p231, %p232
      %p234 = scmp.ne.s32.totalorder %s223, %s224
      %p235 = scmp.eq.s32.totalorder %s31, 0
      %p236 = por %p234, %p235
      %p237 = scmp.ne.s32.totalorder %s223, %s224
      %p238 = scmp.eq.s32.totalorder %s32, 3
      %p239 = por %p237, %p238
      %p241 = scmp.ne.s32.totalorder %s224, %s240
      %p242 = scmp.eq.s32.totalorder %s32, 0
      %p243 = por %p241, %p242
      %p244 = scmp.le.s32.totalorder 1, %s26
      %p245 = scmp.lt.s32.totalorder %s26, 5
      %p246 = pnand %p244, %p245
      %p247 = pneg %p246
      // Predicated region
      $region9: #{tpu_custom_call.1} parent=5 // pred_check
        _
      $region10: #{tpu_custom_call.1} parent=5 // pred_check_branch
        %249 = sbr.rel (%p246) target = $region12
      $region11: #{tpu_custom_call.1} parent=5 // pred_region
        %s250 = ssub.s32 %s26, 1
        // Predicated region
        $region13: #{tpu_custom_call.1} parent=11 // pred_check
          %p251 = pneg %p189
        $region14: #{tpu_custom_call.1} parent=11 // pred_check_branch
          %253 = sbr.rel (%p251) target = $region16
        $region15: #{tpu_custom_call.1} parent=11 // pred_region
          %s255 = ssub.s32 2048, 2048
          %256 = vsyncadd [#allocation13], %s255
          %s257 = sshll.u32 [#allocation12], 4
          %s258 = int_to_ptr.vmem [resolvable:$true] %s257
          %263 = dma.hbm_to_vmem [thread:$0]  %s5, 2048, %s258, [#allocation13], 128, 128, 8
        $region16: #{tpu_custom_call.1} parent=11 // pred_fallthru
          _
        // Predicated region
        $region17: #{tpu_custom_call.1} parent=11 // pred_check
          %p264 = pneg %p210
        $region18: #{tpu_custom_call.1} parent=11 // pred_check_branch
          %266 = sbr.rel (%p264) target = $region20
        $region19: #{tpu_custom_call.1} parent=11 // pred_region
          %s268 = ssub.s32 2048, 2048
          %269 = vsyncadd [#allocation13], %s268
          %s270 = sshll.u32 [#allocation14], 4
          %s271 = int_to_ptr.vmem [resolvable:$true] %s270
          %276 = dma.hbm_to_vmem [thread:$0]  %s6, 2048, %s271, [#allocation13], 128, 128, 8
        $region20: #{tpu_custom_call.1} parent=11 // pred_fallthru
          _
      $region12: #{tpu_custom_call.1} parent=5 // pred_fallthru
        _
      %p277 = scmp.lt.s32.totalorder %s26, 4
      // Predicated region
      $region21: #{tpu_custom_call.1} parent=5 // pred_check
        %p278 = pneg %p277
      $region22: #{tpu_custom_call.1} parent=5 // pred_check_branch
        %280 = sbr.rel (%p278) target = $region24
      $region23: #{tpu_custom_call.1} parent=5 // pred_region
        // Predicated region
        $region25: #{tpu_custom_call.1} parent=23 // pred_check
          %p281 = pneg %p58
        $region26: #{tpu_custom_call.1} parent=23 // pred_check_branch
          %283 = sbr.rel (%p281) target = $region28
        $region27: #{tpu_custom_call.1} parent=23 // pred_region
          %s284 = sand.u32 %s48, 1
          %s285 = scalar_lea.sflag [#allocation4], %s284
          %s286 = sand.u32 %s48, 1
          %s287 = smul.addr %s286, 128
          %s288 = scalar_lea.vmem [#allocation3], %s287
          %s290 = ssub.s32 2048, 2048
          %291 = vsyncadd %s285, %s290
          %s292 = smul.addr %s33, 32
          %s293 = smul.addr %s292, 64
          %s294 = scalar_lea.hbm %s0, %s293
          %s295 = sshll.u32 %s288, 4
          %s296 = int_to_ptr.vmem [resolvable:$true] %s295
          %301 = dma.hbm_to_vmem [thread:$0]  %s294, 2048, %s296, %s285, 128, 128, 8
        $region28: #{tpu_custom_call.1} parent=23 // pred_fallthru
          _
        // Predicated region
        $region29: #{tpu_custom_call.1} parent=23 // pred_check
          %p302 = pneg %p84
        $region30: #{tpu_custom_call.1} parent=23 // pred_check_branch
          %304 = sbr.rel (%p302) target = $region32
        $region31: #{tpu_custom_call.1} parent=23 // pred_region
          %s305 = sand.u32 %s26, 1
          %s306 = scalar_lea.sflag [#allocation7], %s305
          %s307 = sand.u32 %s74, 1
          %s308 = smul.addr %s307, 128
          %s309 = scalar_lea.vmem [#allocation6], %s308
          %s311 = ssub.s32 2048, 2048
          %312 = vsyncadd %s306, %s311
          %s313 = smul.addr %s34, 64
          %s314 = scalar_lea.hbm %s1, %s313
          %s315 = sshll.u32 %s309, 4
          %s316 = int_to_ptr.vmem [resolvable:$true] %s315
          %321 = dma.hbm_to_vmem [thread:$0]  %s314, 2048, %s316, %s306, 128, 64, 4
        $region32: #{tpu_custom_call.1} parent=23 // pred_fallthru
          _
        // Predicated region
        $region33: #{tpu_custom_call.1} parent=23 // pred_check
          %p322 = pneg %p110
        $region34: #{tpu_custom_call.1} parent=23 // pred_check_branch
          %324 = sbr.rel (%p322) target = $region36
        $region35: #{tpu_custom_call.1} parent=23 // pred_region
          %s325 = sand.u32 %s26, 1
          %s326 = scalar_lea.sflag [#allocation7], %s325
          %s327 = sand.u32 %s100, 1
          %s328 = smul.addr %s327, 128
          %s329 = scalar_lea.vmem [#allocation8], %s328
          %s331 = ssub.s32 2048, 2048
          %332 = vsyncadd %s326, %s331
          %s333 = smul.addr %s34, 64
          %s334 = scalar_lea.hbm %s2, %s333
          %s335 = sshll.u32 %s329, 4
          %s336 = int_to_ptr.vmem [resolvable:$true] %s335
          %341 = dma.hbm_to_vmem [thread:$0]  %s334, 2048, %s336, %s326, 128, 64, 4
        $region36: #{tpu_custom_call.1} parent=23 // pred_fallthru
          _
        // Predicated region
        $region37: #{tpu_custom_call.1} parent=23 // pred_check
          %p342 = pneg %p136
        $region38: #{tpu_custom_call.1} parent=23 // pred_check_branch
          %344 = sbr.rel (%p342) target = $region40
        $region39: #{tpu_custom_call.1} parent=23 // pred_region
          %s345 = sand.u32 %s26, 1
          %s346 = scalar_lea.sflag [#allocation10], %s345
          %s347 = sand.u32 %s126, 1
          %s348 = smul.addr %s347, 128
          %s349 = scalar_lea.vmem [#allocation9], %s348
          %s351 = ssub.s32 2048, 2048
          %352 = vsyncadd %s346, %s351
          %s353 = smul.addr %s34, 64
          %s354 = scalar_lea.hbm %s3, %s353
          %s355 = sshll.u32 %s349, 4
          %s356 = int_to_ptr.vmem [resolvable:$true] %s355
          %361 = dma.hbm_to_vmem [thread:$0]  %s354, 2048, %s356, %s346, 128, 64, 4
        $region40: #{tpu_custom_call.1} parent=23 // pred_fallthru
          _
        // Predicated region
        $region41: #{tpu_custom_call.1} parent=23 // pred_check
          %p362 = pneg %p162
        $region42: #{tpu_custom_call.1} parent=23 // pred_check_branch
          %364 = sbr.rel (%p362) target = $region44
        $region43: #{tpu_custom_call.1} parent=23 // pred_region
          %s365 = sand.u32 %s26, 1
          %s366 = scalar_lea.sflag [#allocation10], %s365
          %s367 = sand.u32 %s152, 1
          %s368 = smul.addr %s367, 128
          %s369 = scalar_lea.vmem [#allocation11], %s368
          %s370 = smul.u32 16, %s34
          %s372 = ssub.s32 2048, 2048
          %373 = vsyncadd %s366, %s372
          %s374 = smul.addr %s370, 2
          %s375 = smul.addr %s374, 64
          %s376 = scalar_lea.hbm %s4, %s375
          %s377 = sshll.u32 %s369, 4
          %s378 = int_to_ptr.vmem [resolvable:$true] %s377
          %383 = dma.hbm_to_vmem [thread:$0]  %s376, 2048, %s378, %s366, 128, 128, 8
        $region44: #{tpu_custom_call.1} parent=23 // pred_fallthru
          _
      $region24: #{tpu_custom_call.1} parent=5 // pred_fallthru
        _
      %p384 = scmp.le.s32.totalorder 1, %s26
      %p385 = scmp.lt.s32.totalorder %s26, 5
      %p386 = pnand %p384, %p385
      %p387 = pneg %p386
      // Predicated region
      $region45: #{tpu_custom_call.1} parent=5 // pred_check
        _
      $region46: #{tpu_custom_call.1} parent=5 // pred_check_branch
        %389 = sbr.rel (%p386) target = $region48
      $region47: #{tpu_custom_call.1} parent=5 // pred_region
        %s390 = ssub.s32 %s26, 1
        %s391 = sand.u32 %s51, 1
        %s392 = scalar_lea.sflag [#allocation4], %s391
        %s393 = sand.u32 %s51, 1
        %s394 = smul.addr %s393, 128
        %s395 = scalar_lea.vmem [#allocation3], %s394
        // Predicated region
        $region49: #{tpu_custom_call.1} parent=47 // pred_check
          %p396 = pneg %p64
        $region50: #{tpu_custom_call.1} parent=47 // pred_check_branch
          %398 = sbr.rel (%p396) target = $region52
        $region51: #{tpu_custom_call.1} parent=47 // pred_region
          %399 = dma.done %s392, 2048
        $region52: #{tpu_custom_call.1} parent=47 // pred_fallthru
          _
        %s400 = sand.u32 %s31, 1
        %s401 = scalar_lea.sflag [#allocation7], %s400
        %s402 = sand.u32 %s77, 1
        %s403 = smul.addr %s402, 128
        %s404 = scalar_lea.vmem [#allocation6], %s403
        // Predicated region
        $region53: #{tpu_custom_call.1} parent=47 // pred_check
          %p405 = pneg %p90
        $region54: #{tpu_custom_call.1} parent=47 // pred_check_branch
          %407 = sbr.rel (%p405) target = $region56
        $region55: #{tpu_custom_call.1} parent=47 // pred_region
          %408 = dma.done %s401, 2048
        $region56: #{tpu_custom_call.1} parent=47 // pred_fallthru
          _
        %s409 = sand.u32 %s31, 1
        %s410 = scalar_lea.sflag [#allocation7], %s409
        %s411 = sand.u32 %s103, 1
        %s412 = smul.addr %s411, 128
        %s413 = scalar_lea.vmem [#allocation8], %s412
        // Predicated region
        $region57: #{tpu_custom_call.1} parent=47 // pred_check
          %p414 = pneg %p116
        $region58: #{tpu_custom_call.1} parent=47 // pred_check_branch
          %416 = sbr.rel (%p414) target = $region60
        $region59: #{tpu_custom_call.1} parent=47 // pred_region
          %417 = dma.done %s410, 2048
        $region60: #{tpu_custom_call.1} parent=47 // pred_fallthru
          _
        %s418 = sand.u32 %s31, 1
        %s419 = scalar_lea.sflag [#allocation10], %s418
        %s420 = sand.u32 %s129, 1
        %s421 = smul.addr %s420, 128
        %s422 = scalar_lea.vmem [#allocation9], %s421
        // Predicated region
        $region61: #{tpu_custom_call.1} parent=47 // pred_check
          %p423 = pneg %p142
        $region62: #{tpu_custom_call.1} parent=47 // pred_check_branch
          %425 = sbr.rel (%p423) target = $region64
        $region63: #{tpu_custom_call.1} parent=47 // pred_region
          %426 = dma.done %s419, 2048
        $region64: #{tpu_custom_call.1} parent=47 // pred_fallthru
          _
        %s427 = sand.u32 %s31, 1
        %s428 = scalar_lea.sflag [#allocation10], %s427
        %s429 = sand.u32 %s155, 1
        %s430 = smul.addr %s429, 128
        %s431 = scalar_lea.vmem [#allocation11], %s430
        // Predicated region
        $region65: #{tpu_custom_call.1} parent=47 // pred_check
          %p432 = pneg %p168
        $region66: #{tpu_custom_call.1} parent=47 // pred_check_branch
          %434 = sbr.rel (%p432) target = $region68
        $region67: #{tpu_custom_call.1} parent=47 // pred_region
          %435 = dma.done %s428, 2048
        $region68: #{tpu_custom_call.1} parent=47 // pred_fallthru
          _
        // Predicated region
        $region69: #{tpu_custom_call.1} parent=47 // pred_check
          %p436 = pneg %p189
        $region70: #{tpu_custom_call.1} parent=47 // pred_check_branch
          %438 = sbr.rel (%p436) target = $region72
        $region71: #{tpu_custom_call.1} parent=47 // pred_region
          %439 = dma.done [#allocation13], 2048
        $region72: #{tpu_custom_call.1} parent=47 // pred_fallthru
          _
        // Predicated region
        $region73: #{tpu_custom_call.1} parent=47 // pred_check
          %p440 = pneg %p210
        $region74: #{tpu_custom_call.1} parent=47 // pred_check_branch
          %442 = sbr.rel (%p440) target = $region76
        $region75: #{tpu_custom_call.1} parent=47 // pred_region
          %443 = dma.done [#allocation13], 2048
        $region76: #{tpu_custom_call.1} parent=47 // pred_fallthru
          _
        %s444 = sand.u32 %s51, 1
        %s445 = scalar_lea.sflag [#allocation4], %s444
        %s446 = sand.u32 %s51, 1
        %s447 = smul.addr %s446, 128
        %s448 = scalar_lea.vmem [#allocation3], %s447
        %p449 = pneg %p64
        %p450 = pneg %p61
        %s451 = sand.u32 %s31, 1
        %s452 = scalar_lea.sflag [#allocation7], %s451
        %s453 = sand.u32 %s77, 1
        %s454 = smul.addr %s453, 128
        %s455 = scalar_lea.vmem [#allocation6], %s454
        %p456 = pneg %p90
        %p457 = pneg %p87
        %s458 = sand.u32 %s31, 1
        %s459 = scalar_lea.sflag [#allocation7], %s458
        %s460 = sand.u32 %s103, 1
        %s461 = smul.addr %s460, 128
        %s462 = scalar_lea.vmem [#allocation8], %s461
        %p463 = pneg %p116
        %p464 = pneg %p113
        %s465 = sand.u32 %s31, 1
        %s466 = scalar_lea.sflag [#allocation10], %s465
        %s467 = sand.u32 %s129, 1
        %s468 = smul.addr %s467, 128
        %s469 = scalar_lea.vmem [#allocation9], %s468
        %p470 = pneg %p142
        %p471 = pneg %p139
        %s472 = sand.u32 %s31, 1
        %s473 = scalar_lea.sflag [#allocation10], %s472
        %s474 = sand.u32 %s155, 1
        %s475 = smul.addr %s474, 128
        %s476 = scalar_lea.vmem [#allocation11], %s475
        %p477 = pneg %p168
        %p478 = pneg %p165
        %p479 = pneg %p189
        %p480 = pneg %p186
        %p481 = pneg %p210
        %p482 = pneg %p207
        %p483 = pneg %p236
        %p484 = pneg %p233
        %s485 = sand.u32 %s223, 1
        %s486 = scalar_lea.sflag [#allocation5], %s485
        %s487 = sand.u32 %s223, 1
        %s488 = smul.addr %s487, 128
        %s489 = scalar_lea.vmem [#allocation15], %s488
        %s490 = smul.u32 16, %s36
        %p492 = scmp.eq.s32.totalorder %s36, 0
        // Predicated region
        $region77: #{tpu_custom_call.1} parent=47 // pred_check
          %p493 = pneg %p492
        $region78: #{tpu_custom_call.1} parent=47 // pred_check_branch
          %495 = sbr.rel (%p493) target = $region80
        $region79: #{tpu_custom_call.1} parent=47 // pred_region
          %496 = vst [vmem:[#allocation2] sm:$0xff] 0.0
          %497 = vst [vmem:[#allocation2 + $0x8] sm:$0xff] 0.0
          %498 = vst [vmem:[#allocation2 + $0x10] sm:$0xff] 0.0
          %499 = vst [vmem:[#allocation2 + $0x18] sm:$0xff] 0.0
          %500 = vst [vmem:[#allocation2 + $0x20] sm:$0xff] 0.0
          %501 = vst [vmem:[#allocation2 + $0x28] sm:$0xff] 0.0
          %502 = vst [vmem:[#allocation2 + $0x30] sm:$0xff] 0.0
          %503 = vst [vmem:[#allocation2 + $0x38] sm:$0xff] 0.0
          %504 = vst [vmem:[#allocation2 + $0x40] sm:$0xff] 0.0
          %505 = vst [vmem:[#allocation2 + $0x48] sm:$0xff] 0.0
          %506 = vst [vmem:[#allocation2 + $0x50] sm:$0xff] 0.0
          %507 = vst [vmem:[#allocation2 + $0x58] sm:$0xff] 0.0
          %508 = vst [vmem:[#allocation2 + $0x60] sm:$0xff] 0.0
          %509 = vst [vmem:[#allocation2 + $0x68] sm:$0xff] 0.0
          %510 = vst [vmem:[#allocation2 + $0x70] sm:$0xff] 0.0
          %511 = vst [vmem:[#allocation2 + $0x78] sm:$0xff] 0.0
          %512 = vst [vmem:[#allocation2 + $0x80] sm:$0xff] 0.0
          %513 = vst [vmem:[#allocation2 + $0x88] sm:$0xff] 0.0
          %514 = vst [vmem:[#allocation2 + $0x90] sm:$0xff] 0.0
          %515 = vst [vmem:[#allocation2 + $0x98] sm:$0xff] 0.0
          %516 = vst [vmem:[#allocation2 + $0xa0] sm:$0xff] 0.0
          %517 = vst [vmem:[#allocation2 + $0xa8] sm:$0xff] 0.0
          %518 = vst [vmem:[#allocation2 + $0xb0] sm:$0xff] 0.0
          %519 = vst [vmem:[#allocation2 + $0xb8] sm:$0xff] 0.0
          %520 = vst [vmem:[#allocation2 + $0xc0] sm:$0xff] 0.0
          %521 = vst [vmem:[#allocation2 + $0xc8] sm:$0xff] 0.0
          %522 = vst [vmem:[#allocation2 + $0xd0] sm:$0xff] 0.0
          %523 = vst [vmem:[#allocation2 + $0xd8] sm:$0xff] 0.0
          %524 = vst [vmem:[#allocation2 + $0xe0] sm:$0xff] 0.0
          %525 = vst [vmem:[#allocation2 + $0xe8] sm:$0xff] 0.0
          %526 = vst [vmem:[#allocation2 + $0xf0] sm:$0xff] 0.0
          %527 = vst [vmem:[#allocation2 + $0xf8] sm:$0xff] 0.0
        $region80: #{tpu_custom_call.1} parent=47 // pred_fallthru
          _
        %v528 = vld [vmem:[%s395] sm:$0xff]
        %v529 = vld [vmem:[%s395 + $0x8] sm:$0xff]
        %v530 = vld [vmem:[%s395 + $0x10] sm:$0xff]
        %v531 = vld [vmem:[%s395 + $0x18] sm:$0xff]
        %v532 = vld [vmem:[%s395 + $0x20] sm:$0xff]
        %v533 = vld [vmem:[%s395 + $0x28] sm:$0xff]
        %v534 = vld [vmem:[%s395 + $0x30] sm:$0xff]
        %v535 = vld [vmem:[%s395 + $0x38] sm:$0xff]
        %v536 = vld [vmem:[%s395 + $0x40] sm:$0xff]
        %v537 = vld [vmem:[%s395 + $0x48] sm:$0xff]
        %v538 = vld [vmem:[%s395 + $0x50] sm:$0xff]
        %v539 = vld [vmem:[%s395 + $0x58] sm:$0xff]
        %v540 = vld [vmem:[%s395 + $0x60] sm:$0xff]
        %v541 = vld [vmem:[%s395 + $0x68] sm:$0xff]
        %v542 = vld [vmem:[%s395 + $0x70] sm:$0xff]
        %v543 = vld [vmem:[%s395 + $0x78] sm:$0xff]
        %v544 = vld [vmem:[#allocation12] sm:$0xff]
        %v545 = vld [vmem:[#allocation12 + $0x8] sm:$0xff]
        %v546 = vld [vmem:[#allocation12 + $0x10] sm:$0xff]
        %v547 = vld [vmem:[#allocation12 + $0x18] sm:$0xff]
        %v548 = vld [vmem:[#allocation12 + $0x20] sm:$0xff]
        %v549 = vld [vmem:[#allocation12 + $0x28] sm:$0xff]
        %v550 = vld [vmem:[#allocation12 + $0x30] sm:$0xff]
        %v551 = vld [vmem:[#allocation12 + $0x38] sm:$0xff]
        %v552 = vld [vmem:[#allocation12 + $0x40] sm:$0xff]
        %v553 = vld [vmem:[#allocation12 + $0x48] sm:$0xff]
        %v554 = vld [vmem:[#allocation12 + $0x50] sm:$0xff]
        %v555 = vld [vmem:[#allocation12 + $0x58] sm:$0xff]
        %v556 = vld [vmem:[#allocation12 + $0x60] sm:$0xff]
        %v557 = vld [vmem:[#allocation12 + $0x68] sm:$0xff]
        %v558 = vld [vmem:[#allocation12 + $0x70] sm:$0xff]
        %v559 = vld [vmem:[#allocation12 + $0x78] sm:$0xff]
        %v560 = vld [vmem:[#allocation14] sm:$0xff]
        %v561 = vld [vmem:[#allocation14 + $0x8] sm:$0xff]
        %v562 = vld [vmem:[#allocation14 + $0x10] sm:$0xff]
        %v563 = vld [vmem:[#allocation14 + $0x18] sm:$0xff]
        %v564 = vld [vmem:[#allocation14 + $0x20] sm:$0xff]
        %v565 = vld [vmem:[#allocation14 + $0x28] sm:$0xff]
        %v566 = vld [vmem:[#allocation14 + $0x30] sm:$0xff]
        %v567 = vld [vmem:[#allocation14 + $0x38] sm:$0xff]
        %v568 = vld [vmem:[#allocation14 + $0x40] sm:$0xff]
        %v569 = vld [vmem:[#allocation14 + $0x48] sm:$0xff]
        %v570 = vld [vmem:[#allocation14 + $0x50] sm:$0xff]
        %v571 = vld [vmem:[#allocation14 + $0x58] sm:$0xff]
        %v572 = vld [vmem:[#allocation14 + $0x60] sm:$0xff]
        %v573 = vld [vmem:[#allocation14 + $0x68] sm:$0xff]
        %v574 = vld [vmem:[#allocation14 + $0x70] sm:$0xff]
        %v575 = vld [vmem:[#allocation14 + $0x78] sm:$0xff]
        %v576 = vld [vmem:[%s404] sm:$0xf]
        %v577 = vld [vmem:[%s404 + $0x4] sm:$0xf]
        %v578 = vld [vmem:[%s404 + $0x8] sm:$0xf]
        %v579 = vld [vmem:[%s404 + $0xc] sm:$0xf]
        %v580 = vld [vmem:[%s404 + $0x10] sm:$0xf]
        %v581 = vld [vmem:[%s404 + $0x14] sm:$0xf]
        %v582 = vld [vmem:[%s404 + $0x18] sm:$0xf]
        %v583 = vld [vmem:[%s404 + $0x1c] sm:$0xf]
        %v584 = vld [vmem:[%s404 + $0x20] sm:$0xf]
        %v585 = vld [vmem:[%s404 + $0x24] sm:$0xf]
        %v586 = vld [vmem:[%s404 + $0x28] sm:$0xf]
        %v587 = vld [vmem:[%s404 + $0x2c] sm:$0xf]
        %v588 = vld [vmem:[%s404 + $0x30] sm:$0xf]
        %v589 = vld [vmem:[%s404 + $0x34] sm:$0xf]
        %v590 = vld [vmem:[%s404 + $0x38] sm:$0xf]
        %v591 = vld [vmem:[%s404 + $0x3c] sm:$0xf]
        %v592 = vld [vmem:[%s404 + $0x40] sm:$0xf]
        %v593 = vld [vmem:[%s404 + $0x44] sm:$0xf]
        %v594 = vld [vmem:[%s404 + $0x48] sm:$0xf]
        %v595 = vld [vmem:[%s404 + $0x4c] sm:$0xf]
        %v596 = vld [vmem:[%s404 + $0x50] sm:$0xf]
        %v597 = vld [vmem:[%s404 + $0x54] sm:$0xf]
        %v598 = vld [vmem:[%s404 + $0x58] sm:$0xf]
        %v599 = vld [vmem:[%s404 + $0x5c] sm:$0xf]
        %v600 = vld [vmem:[%s404 + $0x60] sm:$0xf]
        %v601 = vld [vmem:[%s404 + $0x64] sm:$0xf]
        %v602 = vld [vmem:[%s404 + $0x68] sm:$0xf]
        %v603 = vld [vmem:[%s404 + $0x6c] sm:$0xf]
        %v604 = vld [vmem:[%s404 + $0x70] sm:$0xf]
        %v605 = vld [vmem:[%s404 + $0x74] sm:$0xf]
        %v606 = vld [vmem:[%s404 + $0x78] sm:$0xf]
        %v607 = vld [vmem:[%s404 + $0x7c] sm:$0xf]
        %v624 = vunpack.c.l.b16 %v528
        %v625 = vunpack.c.h.b16 %v528
        %v626 = vunpack.c.l.b16 %v529
        %v627 = vunpack.c.h.b16 %v529
        %v628 = vunpack.c.l.b16 %v530
        %v629 = vunpack.c.h.b16 %v530
        %v630 = vunpack.c.l.b16 %v531
        %v631 = vunpack.c.h.b16 %v531
        %v632 = vunpack.c.l.b16 %v532
        %v633 = vunpack.c.h.b16 %v532
        %v634 = vunpack.c.l.b16 %v533
        %v635 = vunpack.c.h.b16 %v533
        %v636 = vunpack.c.l.b16 %v534
        %v637 = vunpack.c.h.b16 %v534
        %v638 = vunpack.c.l.b16 %v535
        %v639 = vunpack.c.h.b16 %v535
        %v640 = vunpack.c.l.b16 %v536
        %v641 = vunpack.c.h.b16 %v536
        %v642 = vunpack.c.l.b16 %v537
        %v643 = vunpack.c.h.b16 %v537
        %v644 = vunpack.c.l.b16 %v538
        %v645 = vunpack.c.h.b16 %v538
        %v646 = vunpack.c.l.b16 %v539
        %v647 = vunpack.c.h.b16 %v539
        %v648 = vunpack.c.l.b16 %v540
        %v649 = vunpack.c.h.b16 %v540
        %v650 = vunpack.c.l.b16 %v541
        %v651 = vunpack.c.h.b16 %v541
        %v652 = vunpack.c.l.b16 %v542
        %v653 = vunpack.c.h.b16 %v542
        %v654 = vunpack.c.l.b16 %v543
        %v655 = vunpack.c.h.b16 %v543
        %v656 = vpack.c.b16 %v626, %v624
        %v657 = vpack.c.b16 %v627, %v625
        %v658 = vpack.c.b16 %v630, %v628
        %v659 = vpack.c.b16 %v631, %v629
        %v660 = vpack.c.b16 %v634, %v632
        %v661 = vpack.c.b16 %v635, %v633
        %v662 = vpack.c.b16 %v638, %v636
        %v663 = vpack.c.b16 %v639, %v637
        %v664 = vpack.c.b16 %v642, %v640
        %v665 = vpack.c.b16 %v643, %v641
        %v666 = vpack.c.b16 %v646, %v644
        %v667 = vpack.c.b16 %v647, %v645
        %v668 = vpack.c.b16 %v650, %v648
        %v669 = vpack.c.b16 %v651, %v649
        %v670 = vpack.c.b16 %v654, %v652
        %v671 = vpack.c.b16 %v655, %v653
        %v720 = vunpack.c.l.b16 %v576
        %v721 = vunpack.c.l.b16 %v577
        %v722 = vunpack.c.l.b16 %v578
        %v723 = vunpack.c.l.b16 %v579
        %v724 = vunpack.c.l.b16 %v580
        %v725 = vunpack.c.l.b16 %v581
        %v726 = vunpack.c.l.b16 %v582
        %v727 = vunpack.c.l.b16 %v583
        %v728 = vunpack.c.l.b16 %v584
        %v729 = vunpack.c.l.b16 %v585
        %v730 = vunpack.c.l.b16 %v586
        %v731 = vunpack.c.l.b16 %v587
        %v732 = vunpack.c.l.b16 %v588
        %v733 = vunpack.c.l.b16 %v589
        %v734 = vunpack.c.l.b16 %v590
        %v735 = vunpack.c.l.b16 %v591
        %v736 = vunpack.c.l.b16 %v592
        %v737 = vunpack.c.l.b16 %v593
        %v738 = vunpack.c.l.b16 %v594
        %v739 = vunpack.c.l.b16 %v595
        %v740 = vunpack.c.l.b16 %v596
        %v741 = vunpack.c.l.b16 %v597
        %v742 = vunpack.c.l.b16 %v598
        %v743 = vunpack.c.l.b16 %v599
        %v744 = vunpack.c.l.b16 %v600
        %v745 = vunpack.c.l.b16 %v601
        %v746 = vunpack.c.l.b16 %v602
        %v747 = vunpack.c.l.b16 %v603
        %v748 = vunpack.c.l.b16 %v604
        %v749 = vunpack.c.l.b16 %v605
        %v750 = vunpack.c.l.b16 %v606
        %v751 = vunpack.c.l.b16 %v607
        %v752 = vpack.c.b16 %v721, %v720
        %v753 = vpack.c.b16 %v723, %v722
        %v754 = vpack.c.b16 %v725, %v724
        %v755 = vpack.c.b16 %v727, %v726
        %v756 = vpack.c.b16 %v729, %v728
        %v757 = vpack.c.b16 %v731, %v730
        %v758 = vpack.c.b16 %v733, %v732
        %v759 = vpack.c.b16 %v735, %v734
        %v760 = vpack.c.b16 %v737, %v736
        %v761 = vpack.c.b16 %v739, %v738
        %v762 = vpack.c.b16 %v741, %v740
        %v763 = vpack.c.b16 %v743, %v742
        %v764 = vpack.c.b16 %v745, %v744
        %v765 = vpack.c.b16 %v747, %v746
        %v766 = vpack.c.b16 %v749, %v748
        %v767 = vpack.c.b16 %v751, %v750
        %784 = vmatprep.subr.bf16.mxu0 0
        %785 = vmatpush1.bf16.msra.mxu0 %v759
        %786 = vmatprep.subr.bf16.mxu0 0
        %787 = vmatpush1.bf16.msra.mxu0 %v758
        %788 = vmatprep.subr.bf16.mxu0 0
        %789 = vmatpush1.bf16.msra.mxu0 %v757
        %790 = vmatprep.subr.bf16.mxu0 0
        %791 = vmatpush1.bf16.msra.mxu0 %v756
        %792 = vmatprep.subr.bf16.mxu0 0
        %793 = vmatpush1.bf16.msra.mxu0 %v755
        %794 = vmatprep.subr.bf16.mxu0 0
        %795 = vmatpush1.bf16.msra.mxu0 %v754
        %796 = vmatprep.subr.bf16.mxu0 0
        %797 = vmatpush1.bf16.msra.mxu0 %v753
        %798 = vmatprep.subr.bf16.mxu0 0
        %799 = vmatpush1.bf16.msra.mxu0 %v752
        %800 = vmatprep.subr.bf16.mxu0 0
        %801 = vmatpush2.bf16.msra.mxu0 %v767
        %802 = vmatprep.subr.bf16.mxu0 0
        %803 = vmatpush2.bf16.msra.mxu0 %v766
        %804 = vmatprep.subr.bf16.mxu0 0
        %805 = vmatpush2.bf16.msra.mxu0 %v765
        %806 = vmatprep.subr.bf16.mxu0 0
        %807 = vmatpush2.bf16.msra.mxu0 %v764
        %808 = vmatprep.subr.bf16.mxu0 0
        %809 = vmatpush2.bf16.msra.mxu0 %v763
        %810 = vmatprep.subr.bf16.mxu0 0
        %811 = vmatpush2.bf16.msra.mxu0 %v762
        %812 = vmatprep.subr.bf16.mxu0 0
        %813 = vmatpush2.bf16.msra.mxu0 %v761
        %814 = vmatprep.subr.bf16.mxu0 0
        %815 = vmatpush2.bf16.msra.mxu0 %v760
        %816 = vmatprep.mubr.bf16.mxu0 %v657
        %817 = vmatmul.mubr.bf16.gmra.mxu0 %v656
        %v818 = vpop.f32.mrf.mxu0
        %v819 = vadd.f32 0.0, %v818
        %v820 = vpop.f32.mrf.mxu0
        %v821 = vpop.f32.mrf.mxu0
        %v822 = vadd.f32 0.0, %v821
        %v823 = vpop.f32.mrf.mxu0
        %824 = vmatprep.mubr.bf16.mxu0 %v659
        %825 = vmatmul.mubr.bf16.gmra.mxu0 %v658
        %v826 = vpop.f32.mrf.mxu0
        %v827 = vadd.f32 0.0, %v826
        %v828 = vpop.f32.mrf.mxu0
        %v829 = vpop.f32.mrf.mxu0
        %v830 = vadd.f32 0.0, %v829
        %v831 = vpop.f32.mrf.mxu0
        %832 = vmatprep.mubr.bf16.mxu0 %v661
        %833 = vmatmul.mubr.bf16.gmra.mxu0 %v660
        %v834 = vpop.f32.mrf.mxu0
        %v835 = vadd.f32 0.0, %v834
        %v836 = vpop.f32.mrf.mxu0
        %v837 = vpop.f32.mrf.mxu0
        %v838 = vadd.f32 0.0, %v837
        %v839 = vpop.f32.mrf.mxu0
        %840 = vmatprep.mubr.bf16.mxu0 %v663
        %841 = vmatmul.mubr.bf16.gmra.mxu0 %v662
        %v842 = vpop.f32.mrf.mxu0
        %v843 = vadd.f32 0.0, %v842
        %v844 = vpop.f32.mrf.mxu0
        %v845 = vpop.f32.mrf.mxu0
        %v846 = vadd.f32 0.0, %v845
        %v847 = vpop.f32.mrf.mxu0
        %848 = vmatprep.mubr.bf16.mxu0 %v665
        %849 = vmatmul.mubr.bf16.gmra.mxu0 %v664
        %v850 = vpop.f32.mrf.mxu0
        %v851 = vadd.f32 0.0, %v850
        %v852 = vpop.f32.mrf.mxu0
        %v853 = vpop.f32.mrf.mxu0
        %v854 = vadd.f32 0.0, %v853
        %v855 = vpop.f32.mrf.mxu0
        %856 = vmatprep.mubr.bf16.mxu0 %v667
        %857 = vmatmul.mubr.bf16.gmra.mxu0 %v666
        %v858 = vpop.f32.mrf.mxu0
        %v859 = vadd.f32 0.0, %v858
        %v860 = vpop.f32.mrf.mxu0
        %v861 = vpop.f32.mrf.mxu0
        %v862 = vadd.f32 0.0, %v861
        %v863 = vpop.f32.mrf.mxu0
        %864 = vmatprep.mubr.bf16.mxu0 %v669
        %865 = vmatmul.mubr.bf16.gmra.mxu0 %v668
        %v866 = vpop.f32.mrf.mxu0
        %v867 = vadd.f32 0.0, %v866
        %v868 = vpop.f32.mrf.mxu0
        %v869 = vpop.f32.mrf.mxu0
        %v870 = vadd.f32 0.0, %v869
        %v871 = vpop.f32.mrf.mxu0
        %872 = vmatprep.mubr.bf16.mxu0 %v671
        %873 = vmatmul.mubr.bf16.gmra.mxu0 %v670
        %v874 = vpop.f32.mrf.mxu0
        %v875 = vadd.f32 0.0, %v874
        %v876 = vpop.f32.mrf.mxu0
        %v877 = vpop.f32.mrf.mxu0
        %v878 = vadd.f32 0.0, %v877
        %v879 = vpop.f32.mrf.mxu0
        %880 = vdwg.mxu0
        %v881 = vld [vmem:[%s413] sm:$0xf]
        %v882 = vld [vmem:[%s413 + $0x4] sm:$0xf]
        %v883 = vld [vmem:[%s413 + $0x8] sm:$0xf]
        %v884 = vld [vmem:[%s413 + $0xc] sm:$0xf]
        %v885 = vld [vmem:[%s413 + $0x10] sm:$0xf]
        %v886 = vld [vmem:[%s413 + $0x14] sm:$0xf]
        %v887 = vld [vmem:[%s413 + $0x18] sm:$0xf]
        %v888 = vld [vmem:[%s413 + $0x1c] sm:$0xf]
        %v889 = vld [vmem:[%s413 + $0x20] sm:$0xf]
        %v890 = vld [vmem:[%s413 + $0x24] sm:$0xf]
        %v891 = vld [vmem:[%s413 + $0x28] sm:$0xf]
        %v892 = vld [vmem:[%s413 + $0x2c] sm:$0xf]
        %v893 = vld [vmem:[%s413 + $0x30] sm:$0xf]
        %v894 = vld [vmem:[%s413 + $0x34] sm:$0xf]
        %v895 = vld [vmem:[%s413 + $0x38] sm:$0xf]
        %v896 = vld [vmem:[%s413 + $0x3c] sm:$0xf]
        %v897 = vld [vmem:[%s413 + $0x40] sm:$0xf]
        %v898 = vld [vmem:[%s413 + $0x44] sm:$0xf]
        %v899 = vld [vmem:[%s413 + $0x48] sm:$0xf]
        %v900 = vld [vmem:[%s413 + $0x4c] sm:$0xf]
        %v901 = vld [vmem:[%s413 + $0x50] sm:$0xf]
        %v902 = vld [vmem:[%s413 + $0x54] sm:$0xf]
        %v903 = vld [vmem:[%s413 + $0x58] sm:$0xf]
        %v904 = vld [vmem:[%s413 + $0x5c] sm:$0xf]
        %v905 = vld [vmem:[%s413 + $0x60] sm:$0xf]
        %v906 = vld [vmem:[%s413 + $0x64] sm:$0xf]
        %v907 = vld [vmem:[%s413 + $0x68] sm:$0xf]
        %v908 = vld [vmem:[%s413 + $0x6c] sm:$0xf]
        %v909 = vld [vmem:[%s413 + $0x70] sm:$0xf]
        %v910 = vld [vmem:[%s413 + $0x74] sm:$0xf]
        %v911 = vld [vmem:[%s413 + $0x78] sm:$0xf]
        %v912 = vld [vmem:[%s413 + $0x7c] sm:$0xf]
        %v945 = vunpack.c.l.b16 %v881
        %v946 = vunpack.c.l.b16 %v882
        %v947 = vunpack.c.l.b16 %v883
        %v948 = vunpack.c.l.b16 %v884
        %v949 = vunpack.c.l.b16 %v885
        %v950 = vunpack.c.l.b16 %v886
        %v951 = vunpack.c.l.b16 %v887
        %v952 = vunpack.c.l.b16 %v888
        %v953 = vunpack.c.l.b16 %v889
        %v954 = vunpack.c.l.b16 %v890
        %v955 = vunpack.c.l.b16 %v891
        %v956 = vunpack.c.l.b16 %v892
        %v957 = vunpack.c.l.b16 %v893
        %v958 = vunpack.c.l.b16 %v894
        %v959 = vunpack.c.l.b16 %v895
        %v960 = vunpack.c.l.b16 %v896
        %v961 = vunpack.c.l.b16 %v897
        %v962 = vunpack.c.l.b16 %v898
        %v963 = vunpack.c.l.b16 %v899
        %v964 = vunpack.c.l.b16 %v900
        %v965 = vunpack.c.l.b16 %v901
        %v966 = vunpack.c.l.b16 %v902
        %v967 = vunpack.c.l.b16 %v903
        %v968 = vunpack.c.l.b16 %v904
        %v969 = vunpack.c.l.b16 %v905
        %v970 = vunpack.c.l.b16 %v906
        %v971 = vunpack.c.l.b16 %v907
        %v972 = vunpack.c.l.b16 %v908
        %v973 = vunpack.c.l.b16 %v909
        %v974 = vunpack.c.l.b16 %v910
        %v975 = vunpack.c.l.b16 %v911
        %v976 = vunpack.c.l.b16 %v912
        %v977 = vpack.c.b16 %v946, %v945
        %v978 = vpack.c.b16 %v948, %v947
        %v979 = vpack.c.b16 %v950, %v949
        %v980 = vpack.c.b16 %v952, %v951
        %v981 = vpack.c.b16 %v954, %v953
        %v982 = vpack.c.b16 %v956, %v955
        %v983 = vpack.c.b16 %v958, %v957
        %v984 = vpack.c.b16 %v960, %v959
        %v985 = vpack.c.b16 %v962, %v961
        %v986 = vpack.c.b16 %v964, %v963
        %v987 = vpack.c.b16 %v966, %v965
        %v988 = vpack.c.b16 %v968, %v967
        %v989 = vpack.c.b16 %v970, %v969
        %v990 = vpack.c.b16 %v972, %v971
        %v991 = vpack.c.b16 %v974, %v973
        %v992 = vpack.c.b16 %v976, %v975
        %1009 = vmatprep.subr.bf16.mxu0 0
        %1010 = vmatpush1.bf16.msra.mxu0 %v984
        %1011 = vmatprep.subr.bf16.mxu0 0
        %1012 = vmatpush1.bf16.msra.mxu0 %v983
        %1013 = vmatprep.subr.bf16.mxu0 0
        %1014 = vmatpush1.bf16.msra.mxu0 %v982
        %1015 = vmatprep.subr.bf16.mxu0 0
        %1016 = vmatpush1.bf16.msra.mxu0 %v981
        %1017 = vmatprep.subr.bf16.mxu0 0
        %1018 = vmatpush1.bf16.msra.mxu0 %v980
        %1019 = vmatprep.subr.bf16.mxu0 0
        %1020 = vmatpush1.bf16.msra.mxu0 %v979
        %1021 = vmatprep.subr.bf16.mxu0 0
        %1022 = vmatpush1.bf16.msra.mxu0 %v978
        %1023 = vmatprep.subr.bf16.mxu0 0
        %1024 = vmatpush1.bf16.msra.mxu0 %v977
        %1025 = vmatprep.subr.bf16.mxu0 0
        %1026 = vmatpush2.bf16.msra.mxu0 %v992
        %1027 = vmatprep.subr.bf16.mxu0 0
        %1028 = vmatpush2.bf16.msra.mxu0 %v991
        %1029 = vmatprep.subr.bf16.mxu0 0
        %1030 = vmatpush2.bf16.msra.mxu0 %v990
        %1031 = vmatprep.subr.bf16.mxu0 0
        %1032 = vmatpush2.bf16.msra.mxu0 %v989
        %1033 = vmatprep.subr.bf16.mxu0 0
        %1034 = vmatpush2.bf16.msra.mxu0 %v988
        %1035 = vmatprep.subr.bf16.mxu0 0
        %1036 = vmatpush2.bf16.msra.mxu0 %v987
        %1037 = vmatprep.subr.bf16.mxu0 0
        %1038 = vmatpush2.bf16.msra.mxu0 %v986
        %1039 = vmatprep.subr.bf16.mxu0 0
        %1040 = vmatpush2.bf16.msra.mxu0 %v985
        %1041 = vmatprep.mubr.bf16.mxu0 %v657
        %1042 = vmatmul.mubr.bf16.gmra.mxu0 %v656
        %v1043 = vpop.f32.mrf.mxu0
        %v1044 = vadd.f32 0.0, %v1043
        %v1045 = vpop.f32.mrf.mxu0
        %v1046 = vpop.f32.mrf.mxu0
        %v1047 = vadd.f32 0.0, %v1046
        %v1048 = vpop.f32.mrf.mxu0
        %1049 = vmatprep.mubr.bf16.mxu0 %v659
        %1050 = vmatmul.mubr.bf16.gmra.mxu0 %v658
        %v1051 = vpop.f32.mrf.mxu0
        %v1052 = vadd.f32 0.0, %v1051
        %v1053 = vpop.f32.mrf.mxu0
        %v1054 = vpop.f32.mrf.mxu0
        %v1055 = vadd.f32 0.0, %v1054
        %v1056 = vpop.f32.mrf.mxu0
        %1057 = vmatprep.mubr.bf16.mxu0 %v661
        %1058 = vmatmul.mubr.bf16.gmra.mxu0 %v660
        %v1059 = vpop.f32.mrf.mxu0
        %v1060 = vadd.f32 0.0, %v1059
        %v1061 = vpop.f32.mrf.mxu0
        %v1062 = vpop.f32.mrf.mxu0
        %v1063 = vadd.f32 0.0, %v1062
        %v1064 = vpop.f32.mrf.mxu0
        %1065 = vmatprep.mubr.bf16.mxu0 %v663
        %1066 = vmatmul.mubr.bf16.gmra.mxu0 %v662
        %v1067 = vpop.f32.mrf.mxu0
        %v1068 = vadd.f32 0.0, %v1067
        %v1069 = vpop.f32.mrf.mxu0
        %v1070 = vpop.f32.mrf.mxu0
        %v1071 = vadd.f32 0.0, %v1070
        %v1072 = vpop.f32.mrf.mxu0
        %1073 = vmatprep.mubr.bf16.mxu0 %v665
        %1074 = vmatmul.mubr.bf16.gmra.mxu0 %v664
        %v1075 = vpop.f32.mrf.mxu0
        %v1076 = vadd.f32 0.0, %v1075
        %v1077 = vpop.f32.mrf.mxu0
        %v1078 = vpop.f32.mrf.mxu0
        %v1079 = vadd.f32 0.0, %v1078
        %v1080 = vpop.f32.mrf.mxu0
        %1081 = vmatprep.mubr.bf16.mxu0 %v667
        %1082 = vmatmul.mubr.bf16.gmra.mxu0 %v666
        %v1083 = vpop.f32.mrf.mxu0
        %v1084 = vadd.f32 0.0, %v1083
        %v1085 = vpop.f32.mrf.mxu0
        %v1086 = vpop.f32.mrf.mxu0
        %v1087 = vadd.f32 0.0, %v1086
        %v1088 = vpop.f32.mrf.mxu0
        %1089 = vmatprep.mubr.bf16.mxu0 %v669
        %1090 = vmatmul.mubr.bf16.gmra.mxu0 %v668
        %v1091 = vpop.f32.mrf.mxu0
        %v1092 = vadd.f32 0.0, %v1091
        %v1093 = vpop.f32.mrf.mxu0
        %v1094 = vpop.f32.mrf.mxu0
        %v1095 = vadd.f32 0.0, %v1094
        %v1096 = vpop.f32.mrf.mxu0
        %1097 = vmatprep.mubr.bf16.mxu0 %v671
        %1098 = vmatmul.mubr.bf16.gmra.mxu0 %v670
        %v1099 = vpop.f32.mrf.mxu0
        %v1100 = vadd.f32 0.0, %v1099
        %v1101 = vpop.f32.mrf.mxu0
        %v1102 = vpop.f32.mrf.mxu0
        %v1103 = vadd.f32 0.0, %v1102
        %v1104 = vpop.f32.mrf.mxu0
        %1105 = vdwg.mxu0
        %v1106 = vld [vmem:[%s422] sm:$0xf]
        %v1107 = vld [vmem:[%s422 + $0x4] sm:$0xf]
        %v1108 = vld [vmem:[%s422 + $0x8] sm:$0xf]
        %v1109 = vld [vmem:[%s422 + $0xc] sm:$0xf]
        %v1110 = vld [vmem:[%s422 + $0x10] sm:$0xf]
        %v1111 = vld [vmem:[%s422 + $0x14] sm:$0xf]
        %v1112 = vld [vmem:[%s422 + $0x18] sm:$0xf]
        %v1113 = vld [vmem:[%s422 + $0x1c] sm:$0xf]
        %v1114 = vld [vmem:[%s422 + $0x20] sm:$0xf]
        %v1115 = vld [vmem:[%s422 + $0x24] sm:$0xf]
        %v1116 = vld [vmem:[%s422 + $0x28] sm:$0xf]
        %v1117 = vld [vmem:[%s422 + $0x2c] sm:$0xf]
        %v1118 = vld [vmem:[%s422 + $0x30] sm:$0xf]
        %v1119 = vld [vmem:[%s422 + $0x34] sm:$0xf]
        %v1120 = vld [vmem:[%s422 + $0x38] sm:$0xf]
        %v1121 = vld [vmem:[%s422 + $0x3c] sm:$0xf]
        %v1122 = vld [vmem:[%s422 + $0x40] sm:$0xf]
        %v1123 = vld [vmem:[%s422 + $0x44] sm:$0xf]
        %v1124 = vld [vmem:[%s422 + $0x48] sm:$0xf]
        %v1125 = vld [vmem:[%s422 + $0x4c] sm:$0xf]
        %v1126 = vld [vmem:[%s422 + $0x50] sm:$0xf]
        %v1127 = vld [vmem:[%s422 + $0x54] sm:$0xf]
        %v1128 = vld [vmem:[%s422 + $0x58] sm:$0xf]
        %v1129 = vld [vmem:[%s422 + $0x5c] sm:$0xf]
        %v1130 = vld [vmem:[%s422 + $0x60] sm:$0xf]
        %v1131 = vld [vmem:[%s422 + $0x64] sm:$0xf]
        %v1132 = vld [vmem:[%s422 + $0x68] sm:$0xf]
        %v1133 = vld [vmem:[%s422 + $0x6c] sm:$0xf]
        %v1134 = vld [vmem:[%s422 + $0x70] sm:$0xf]
        %v1135 = vld [vmem:[%s422 + $0x74] sm:$0xf]
        %v1136 = vld [vmem:[%s422 + $0x78] sm:$0xf]
        %v1137 = vld [vmem:[%s422 + $0x7c] sm:$0xf]
        %v1170 = vunpack.c.l.b16 %v1106
        %v1171 = vunpack.c.l.b16 %v1107
        %v1172 = vunpack.c.l.b16 %v1108
        %v1173 = vunpack.c.l.b16 %v1109
        %v1174 = vunpack.c.l.b16 %v1110
        %v1175 = vunpack.c.l.b16 %v1111
        %v1176 = vunpack.c.l.b16 %v1112
        %v1177 = vunpack.c.l.b16 %v1113
        %v1178 = vunpack.c.l.b16 %v1114
        %v1179 = vunpack.c.l.b16 %v1115
        %v1180 = vunpack.c.l.b16 %v1116
        %v1181 = vunpack.c.l.b16 %v1117
        %v1182 = vunpack.c.l.b16 %v1118
        %v1183 = vunpack.c.l.b16 %v1119
        %v1184 = vunpack.c.l.b16 %v1120
        %v1185 = vunpack.c.l.b16 %v1121
        %v1186 = vunpack.c.l.b16 %v1122
        %v1187 = vunpack.c.l.b16 %v1123
        %v1188 = vunpack.c.l.b16 %v1124
        %v1189 = vunpack.c.l.b16 %v1125
        %v1190 = vunpack.c.l.b16 %v1126
        %v1191 = vunpack.c.l.b16 %v1127
        %v1192 = vunpack.c.l.b16 %v1128
        %v1193 = vunpack.c.l.b16 %v1129
        %v1194 = vunpack.c.l.b16 %v1130
        %v1195 = vunpack.c.l.b16 %v1131
        %v1196 = vunpack.c.l.b16 %v1132
        %v1197 = vunpack.c.l.b16 %v1133
        %v1198 = vunpack.c.l.b16 %v1134
        %v1199 = vunpack.c.l.b16 %v1135
        %v1200 = vunpack.c.l.b16 %v1136
        %v1201 = vunpack.c.l.b16 %v1137
        %v1202 = vpack.c.b16 %v1171, %v1170
        %v1203 = vpack.c.b16 %v1173, %v1172
        %v1204 = vpack.c.b16 %v1175, %v1174
        %v1205 = vpack.c.b16 %v1177, %v1176
        %v1206 = vpack.c.b16 %v1179, %v1178
        %v1207 = vpack.c.b16 %v1181, %v1180
        %v1208 = vpack.c.b16 %v1183, %v1182
        %v1209 = vpack.c.b16 %v1185, %v1184
        %v1210 = vpack.c.b16 %v1187, %v1186
        %v1211 = vpack.c.b16 %v1189, %v1188
        %v1212 = vpack.c.b16 %v1191, %v1190
        %v1213 = vpack.c.b16 %v1193, %v1192
        %v1214 = vpack.c.b16 %v1195, %v1194
        %v1215 = vpack.c.b16 %v1197, %v1196
        %v1216 = vpack.c.b16 %v1199, %v1198
        %v1217 = vpack.c.b16 %v1201, %v1200
        %1234 = vmatprep.subr.bf16.mxu0 0
        %1235 = vmatpush1.bf16.msra.mxu0 %v1209
        %1236 = vmatprep.subr.bf16.mxu0 0
        %1237 = vmatpush1.bf16.msra.mxu0 %v1208
        %1238 = vmatprep.subr.bf16.mxu0 0
        %1239 = vmatpush1.bf16.msra.mxu0 %v1207
        %1240 = vmatprep.subr.bf16.mxu0 0
        %1241 = vmatpush1.bf16.msra.mxu0 %v1206
        %1242 = vmatprep.subr.bf16.mxu0 0
        %1243 = vmatpush1.bf16.msra.mxu0 %v1205
        %1244 = vmatprep.subr.bf16.mxu0 0
        %1245 = vmatpush1.bf16.msra.mxu0 %v1204
        %1246 = vmatprep.subr.bf16.mxu0 0
        %1247 = vmatpush1.bf16.msra.mxu0 %v1203
        %1248 = vmatprep.subr.bf16.mxu0 0
        %1249 = vmatpush1.bf16.msra.mxu0 %v1202
        %1250 = vmatprep.subr.bf16.mxu0 0
        %1251 = vmatpush2.bf16.msra.mxu0 %v1217
        %1252 = vmatprep.subr.bf16.mxu0 0
        %1253 = vmatpush2.bf16.msra.mxu0 %v1216
        %1254 = vmatprep.subr.bf16.mxu0 0
        %1255 = vmatpush2.bf16.msra.mxu0 %v1215
        %1256 = vmatprep.subr.bf16.mxu0 0
        %1257 = vmatpush2.bf16.msra.mxu0 %v1214
        %1258 = vmatprep.subr.bf16.mxu0 0
        %1259 = vmatpush2.bf16.msra.mxu0 %v1213
        %1260 = vmatprep.subr.bf16.mxu0 0
        %1261 = vmatpush2.bf16.msra.mxu0 %v1212
        %1262 = vmatprep.subr.bf16.mxu0 0
        %1263 = vmatpush2.bf16.msra.mxu0 %v1211
        %1264 = vmatprep.subr.bf16.mxu0 0
        %1265 = vmatpush2.bf16.msra.mxu0 %v1210
        %1266 = vmatprep.mubr.bf16.mxu0 %v657
        %1267 = vmatmul.mubr.bf16.gmra.mxu0 %v656
        %v1268 = vpop.f32.mrf.mxu0
        %v1269 = vadd.f32 0.0, %v1268
        %v1270 = vpop.f32.mrf.mxu0
        %v1271 = vpop.f32.mrf.mxu0
        %v1272 = vadd.f32 0.0, %v1271
        %v1273 = vpop.f32.mrf.mxu0
        %1274 = vmatprep.mubr.bf16.mxu0 %v659
        %1275 = vmatmul.mubr.bf16.gmra.mxu0 %v658
        %v1276 = vpop.f32.mrf.mxu0
        %v1277 = vadd.f32 0.0, %v1276
        %v1278 = vpop.f32.mrf.mxu0
        %v1279 = vpop.f32.mrf.mxu0
        %v1280 = vadd.f32 0.0, %v1279
        %v1281 = vpop.f32.mrf.mxu0
        %1282 = vmatprep.mubr.bf16.mxu0 %v661
        %1283 = vmatmul.mubr.bf16.gmra.mxu0 %v660
        %v1284 = vpop.f32.mrf.mxu0
        %v1285 = vadd.f32 0.0, %v1284
        %v1286 = vpop.f32.mrf.mxu0
        %v1287 = vpop.f32.mrf.mxu0
        %v1288 = vadd.f32 0.0, %v1287
        %v1289 = vpop.f32.mrf.mxu0
        %1290 = vmatprep.mubr.bf16.mxu0 %v663
        %1291 = vmatmul.mubr.bf16.gmra.mxu0 %v662
        %v1292 = vpop.f32.mrf.mxu0
        %v1293 = vadd.f32 0.0, %v1292
        %v1294 = vpop.f32.mrf.mxu0
        %v1295 = vpop.f32.mrf.mxu0
        %v1296 = vadd.f32 0.0, %v1295
        %v1297 = vpop.f32.mrf.mxu0
        %1298 = vmatprep.mubr.bf16.mxu0 %v665
        %1299 = vmatmul.mubr.bf16.gmra.mxu0 %v664
        %v1300 = vpop.f32.mrf.mxu0
        %v1301 = vadd.f32 0.0, %v1300
        %v1302 = vpop.f32.mrf.mxu0
        %v1303 = vpop.f32.mrf.mxu0
        %v1304 = vadd.f32 0.0, %v1303
        %v1305 = vpop.f32.mrf.mxu0
        %1306 = vmatprep.mubr.bf16.mxu0 %v667
        %1307 = vmatmul.mubr.bf16.gmra.mxu0 %v666
        %v1308 = vpop.f32.mrf.mxu0
        %v1309 = vadd.f32 0.0, %v1308
        %v1310 = vpop.f32.mrf.mxu0
        %v1311 = vpop.f32.mrf.mxu0
        %v1312 = vadd.f32 0.0, %v1311
        %v1313 = vpop.f32.mrf.mxu0
        %1314 = vmatprep.mubr.bf16.mxu0 %v669
        %1315 = vmatmul.mubr.bf16.gmra.mxu0 %v668
        %v1316 = vpop.f32.mrf.mxu0
        %v1317 = vadd.f32 0.0, %v1316
        %v1318 = vpop.f32.mrf.mxu0
        %v1319 = vpop.f32.mrf.mxu0
        %v1320 = vadd.f32 0.0, %v1319
        %v1321 = vpop.f32.mrf.mxu0
        %1322 = vmatprep.mubr.bf16.mxu0 %v671
        %1323 = vmatmul.mubr.bf16.gmra.mxu0 %v670
        %v1324 = vpop.f32.mrf.mxu0
        %v1325 = vadd.f32 0.0, %v1324
        %v1326 = vpop.f32.mrf.mxu0
        %v1327 = vpop.f32.mrf.mxu0
        %v1328 = vadd.f32 0.0, %v1327
        %v1329 = vpop.f32.mrf.mxu0
        %1330 = vdwg.mxu0
        %v1331 = vpack.c.bf16 %v1272, %v1269
        %v1332 = vpack.c.bf16 %v1280, %v1277
        %v1333 = vpack.c.bf16 %v1288, %v1285
        %v1334 = vpack.c.bf16 %v1296, %v1293
        %v1335 = vpack.c.bf16 %v1304, %v1301
        %v1336 = vpack.c.bf16 %v1312, %v1309
        %v1337 = vpack.c.bf16 %v1320, %v1317
        %v1338 = vpack.c.bf16 %v1328, %v1325
        %v1339 = vmul.f32 %v819, %v560
        %v1340 = vmul.f32 %v822, %v561
        %v1341 = vmul.f32 %v827, %v562
        %v1342 = vmul.f32 %v830, %v563
        %v1343 = vmul.f32 %v835, %v564
        %v1344 = vmul.f32 %v838, %v565
        %v1345 = vmul.f32 %v843, %v566
        %v1346 = vmul.f32 %v846, %v567
        %v1347 = vmul.f32 %v851, %v568
        %v1348 = vmul.f32 %v854, %v569
        %v1349 = vmul.f32 %v859, %v570
        %v1350 = vmul.f32 %v862, %v571
        %v1351 = vmul.f32 %v867, %v572
        %v1352 = vmul.f32 %v870, %v573
        %v1353 = vmul.f32 %v875, %v574
        %v1354 = vmul.f32 %v878, %v575
        %1355 = vrot.lane.b32.xlu0 %v819, 64
        %v1356 = vpop.permute.xlu0 %1355
        %1357 = vrot.lane.b32.xlu0 %v822, 64
        %v1358 = vpop.permute.xlu0 %1357
        %1359 = vrot.lane.b32.xlu0 %v827, 64
        %v1360 = vpop.permute.xlu0 %1359
        %1361 = vrot.lane.b32.xlu0 %v830, 64
        %v1362 = vpop.permute.xlu0 %1361
        %1363 = vrot.lane.b32.xlu0 %v835, 64
        %v1364 = vpop.permute.xlu0 %1363
        %1365 = vrot.lane.b32.xlu0 %v838, 64
        %v1366 = vpop.permute.xlu0 %1365
        %1367 = vrot.lane.b32.xlu0 %v843, 64
        %v1368 = vpop.permute.xlu0 %1367
        %1369 = vrot.lane.b32.xlu0 %v846, 64
        %v1370 = vpop.permute.xlu0 %1369
        %1371 = vrot.lane.b32.xlu0 %v851, 64
        %v1372 = vpop.permute.xlu0 %1371
        %1373 = vrot.lane.b32.xlu0 %v854, 64
        %v1374 = vpop.permute.xlu0 %1373
        %1375 = vrot.lane.b32.xlu0 %v859, 64
        %v1376 = vpop.permute.xlu0 %1375
        %1377 = vrot.lane.b32.xlu0 %v862, 64
        %v1378 = vpop.permute.xlu0 %1377
        %1379 = vrot.lane.b32.xlu0 %v867, 64
        %v1380 = vpop.permute.xlu0 %1379
        %1381 = vrot.lane.b32.xlu0 %v870, 64
        %v1382 = vpop.permute.xlu0 %1381
        %1383 = vrot.lane.b32.xlu0 %v875, 64
        %v1384 = vpop.permute.xlu0 %1383
        %1385 = vrot.lane.b32.xlu0 %v878, 64
        %v1386 = vpop.permute.xlu0 %1385
        %v1387 = vmul.f32 %v1356, %v544
        %v1388 = vmul.f32 %v1358, %v545
        %v1389 = vmul.f32 %v1360, %v546
        %v1390 = vmul.f32 %v1362, %v547
        %v1391 = vmul.f32 %v1364, %v548
        %v1392 = vmul.f32 %v1366, %v549
        %v1393 = vmul.f32 %v1368, %v550
        %v1394 = vmul.f32 %v1370, %v551
        %v1395 = vmul.f32 %v1372, %v552
        %v1396 = vmul.f32 %v1374, %v553
        %v1397 = vmul.f32 %v1376, %v554
        %v1398 = vmul.f32 %v1378, %v555
        %v1399 = vmul.f32 %v1380, %v556
        %v1400 = vmul.f32 %v1382, %v557
        %v1401 = vmul.f32 %v1384, %v558
        %v1402 = vmul.f32 %v1386, %v559
        %v1403 = vadd.f32 %v1339, %v1387
        %v1404 = vadd.f32 %v1340, %v1388
        %v1405 = vadd.f32 %v1341, %v1389
        %v1406 = vadd.f32 %v1342, %v1390
        %v1407 = vadd.f32 %v1343, %v1391
        %v1408 = vadd.f32 %v1344, %v1392
        %v1409 = vadd.f32 %v1345, %v1393
        %v1410 = vadd.f32 %v1346, %v1394
        %v1411 = vadd.f32 %v1347, %v1395
        %v1412 = vadd.f32 %v1348, %v1396
        %v1413 = vadd.f32 %v1349, %v1397
        %v1414 = vadd.f32 %v1350, %v1398
        %v1415 = vadd.f32 %v1351, %v1399
        %v1416 = vadd.f32 %v1352, %v1400
        %v1417 = vadd.f32 %v1353, %v1401
        %v1418 = vadd.f32 %v1354, %v1402
        %v1419 = vmul.f32 %v1044, %v560
        %v1420 = vmul.f32 %v1047, %v561
        %v1421 = vmul.f32 %v1052, %v562
        %v1422 = vmul.f32 %v1055, %v563
        %v1423 = vmul.f32 %v1060, %v564
        %v1424 = vmul.f32 %v1063, %v565
        %v1425 = vmul.f32 %v1068, %v566
        %v1426 = vmul.f32 %v1071, %v567
        %v1427 = vmul.f32 %v1076, %v568
        %v1428 = vmul.f32 %v1079, %v569
        %v1429 = vmul.f32 %v1084, %v570
        %v1430 = vmul.f32 %v1087, %v571
        %v1431 = vmul.f32 %v1092, %v572
        %v1432 = vmul.f32 %v1095, %v573
        %v1433 = vmul.f32 %v1100, %v574
        %v1434 = vmul.f32 %v1103, %v575
        %1435 = vrot.lane.b32.xlu0 %v1044, 64
        %v1436 = vpop.permute.xlu0 %1435
        %1437 = vrot.lane.b32.xlu0 %v1047, 64
        %v1438 = vpop.permute.xlu0 %1437
        %1439 = vrot.lane.b32.xlu0 %v1052, 64
        %v1440 = vpop.permute.xlu0 %1439
        %1441 = vrot.lane.b32.xlu0 %v1055, 64
        %v1442 = vpop.permute.xlu0 %1441
        %1443 = vrot.lane.b32.xlu0 %v1060, 64
        %v1444 = vpop.permute.xlu0 %1443
        %1445 = vrot.lane.b32.xlu0 %v1063, 64
        %v1446 = vpop.permute.xlu0 %1445
        %1447 = vrot.lane.b32.xlu0 %v1068, 64
        %v1448 = vpop.permute.xlu0 %1447
        %1449 = vrot.lane.b32.xlu0 %v1071, 64
        %v1450 = vpop.permute.xlu0 %1449
        %1451 = vrot.lane.b32.xlu0 %v1076, 64
        %v1452 = vpop.permute.xlu0 %1451
        %1453 = vrot.lane.b32.xlu0 %v1079, 64
        %v1454 = vpop.permute.xlu0 %1453
        %1455 = vrot.lane.b32.xlu0 %v1084, 64
        %v1456 = vpop.permute.xlu0 %1455
        %1457 = vrot.lane.b32.xlu0 %v1087, 64
        %v1458 = vpop.permute.xlu0 %1457
        %1459 = vrot.lane.b32.xlu0 %v1092, 64
        %v1460 = vpop.permute.xlu0 %1459
        %1461 = vrot.lane.b32.xlu0 %v1095, 64
        %v1462 = vpop.permute.xlu0 %1461
        %1463 = vrot.lane.b32.xlu0 %v1100, 64
        %v1464 = vpop.permute.xlu0 %1463
        %1465 = vrot.lane.b32.xlu0 %v1103, 64
        %v1466 = vpop.permute.xlu0 %1465
        %v1467 = vmul.f32 %v1436, %v544
        %v1468 = vmul.f32 %v1438, %v545
        %v1469 = vmul.f32 %v1440, %v546
        %v1470 = vmul.f32 %v1442, %v547
        %v1471 = vmul.f32 %v1444, %v548
        %v1472 = vmul.f32 %v1446, %v549
        %v1473 = vmul.f32 %v1448, %v550
        %v1474 = vmul.f32 %v1450, %v551
        %v1475 = vmul.f32 %v1452, %v552
        %v1476 = vmul.f32 %v1454, %v553
        %v1477 = vmul.f32 %v1456, %v554
        %v1478 = vmul.f32 %v1458, %v555
        %v1479 = vmul.f32 %v1460, %v556
        %v1480 = vmul.f32 %v1462, %v557
        %v1481 = vmul.f32 %v1464, %v558
        %v1482 = vmul.f32 %v1466, %v559
        %v1483 = vadd.f32 %v1419, %v1467
        %v1484 = vadd.f32 %v1420, %v1468
        %v1485 = vadd.f32 %v1421, %v1469
        %v1486 = vadd.f32 %v1422, %v1470
        %v1487 = vadd.f32 %v1423, %v1471
        %v1488 = vadd.f32 %v1424, %v1472
        %v1489 = vadd.f32 %v1425, %v1473
        %v1490 = vadd.f32 %v1426, %v1474
        %v1491 = vadd.f32 %v1427, %v1475
        %v1492 = vadd.f32 %v1428, %v1476
        %v1493 = vadd.f32 %v1429, %v1477
        %v1494 = vadd.f32 %v1430, %v1478
        %v1495 = vadd.f32 %v1431, %v1479
        %v1496 = vadd.f32 %v1432, %v1480
        %v1497 = vadd.f32 %v1433, %v1481
        %v1498 = vadd.f32 %v1434, %v1482
        %v1499 = vmul.f32 %v1403, 0.088388346
        %v1500 = vmul.f32 %v1404, 0.088388346
        %v1501 = vmul.f32 %v1405, 0.088388346
        %v1502 = vmul.f32 %v1406, 0.088388346
        %v1503 = vmul.f32 %v1407, 0.088388346
        %v1504 = vmul.f32 %v1408, 0.088388346
        %v1505 = vmul.f32 %v1409, 0.088388346
        %v1506 = vmul.f32 %v1410, 0.088388346
        %v1507 = vmul.f32 %v1411, 0.088388346
        %v1508 = vmul.f32 %v1412, 0.088388346
        %v1509 = vmul.f32 %v1413, 0.088388346
        %v1510 = vmul.f32 %v1414, 0.088388346
        %v1511 = vmul.f32 %v1415, 0.088388346
        %v1512 = vmul.f32 %v1416, 0.088388346
        %v1513 = vmul.f32 %v1417, 0.088388346
        %v1514 = vmul.f32 %v1418, 0.088388346
        %v1515 = vpack.c.bf16 %v1500, %v1499
        %v1516 = vpack.c.bf16 %v1502, %v1501
        %v1517 = vpack.c.bf16 %v1504, %v1503
        %v1518 = vpack.c.bf16 %v1506, %v1505
        %v1519 = vpack.c.bf16 %v1508, %v1507
        %v1520 = vpack.c.bf16 %v1510, %v1509
        %v1521 = vpack.c.bf16 %v1512, %v1511
        %v1522 = vpack.c.bf16 %v1514, %v1513
        %v1523 = vpack.c.bf16 %v1484, %v1483
        %v1524 = vpack.c.bf16 %v1486, %v1485
        %v1525 = vpack.c.bf16 %v1488, %v1487
        %v1526 = vpack.c.bf16 %v1490, %v1489
        %v1527 = vpack.c.bf16 %v1492, %v1491
        %v1528 = vpack.c.bf16 %v1494, %v1493
        %v1529 = vpack.c.bf16 %v1496, %v1495
        %v1530 = vpack.c.bf16 %v1498, %v1497
        %1531 = vmatprep.subr.bf16.mxu0 0
        %1532 = vmatpush1.bf16.xpose.msra.mxu0 %v1530
        %1533 = vmatprep.subr.bf16.mxu0 0
        %1534 = vmatpush1.bf16.xpose.msra.mxu0 %v1529
        %1535 = vmatprep.subr.bf16.mxu0 0
        %1536 = vmatpush1.bf16.xpose.msra.mxu0 %v1528
        %1537 = vmatprep.subr.bf16.mxu0 0
        %1538 = vmatpush1.bf16.xpose.msra.mxu0 %v1527
        %1539 = vmatprep.subr.bf16.mxu0 0
        %1540 = vmatpush1.bf16.xpose.msra.mxu0 %v1526
        %1541 = vmatprep.subr.bf16.mxu0 0
        %1542 = vmatpush1.bf16.xpose.msra.mxu0 %v1525
        %1543 = vmatprep.subr.bf16.mxu0 0
        %1544 = vmatpush1.bf16.xpose.msra.mxu0 %v1524
        %1545 = vmatprep.subr.bf16.mxu0 0
        %1546 = vmatpush1.bf16.xpose.msra.mxu0 %v1523
        %1547 = vmatprep.subr.bf16.mxu0 0
        %1548 = vmatpush2.bf16.xpose.msra.mxu0 0
        %1549 = vmatprep.subr.bf16.mxu0 0
        %1550 = vmatpush2.bf16.xpose.msra.mxu0 0
        %1551 = vmatprep.subr.bf16.mxu0 0
        %1552 = vmatpush2.bf16.xpose.msra.mxu0 0
        %1553 = vmatprep.subr.bf16.mxu0 0
        %1554 = vmatpush2.bf16.xpose.msra.mxu0 0
        %1555 = vmatprep.subr.bf16.mxu0 0
        %1556 = vmatpush2.bf16.xpose.msra.mxu0 0
        %1557 = vmatprep.subr.bf16.mxu0 0
        %1558 = vmatpush2.bf16.xpose.msra.mxu0 0
        %1559 = vmatprep.subr.bf16.mxu0 0
        %1560 = vmatpush2.bf16.xpose.msra.mxu0 0
        %1561 = vmatprep.subr.bf16.mxu0 0
        %1562 = vmatpush2.bf16.xpose.msra.mxu0 0
        %1563 = vmatprep.mubr.bf16.mxu0 0
        %1564 = vmatmul.mubr.bf16.gmra.mxu0 %v1515
        %v1565 = vpop.f32.mrf.mxu0
        %v1566 = vadd.f32 0.0, %v1565
        %v1567 = vpop.f32.mrf.mxu0
        %v1568 = vpop.f32.mrf.mxu0
        %v1569 = vadd.f32 0.0, %v1568
        %v1570 = vpop.f32.mrf.mxu0
        %1571 = vmatprep.mubr.bf16.mxu0 0
        %1572 = vmatmul.mubr.bf16.gmra.mxu0 %v1516
        %v1573 = vpop.f32.mrf.mxu0
        %v1574 = vadd.f32 0.0, %v1573
        %v1575 = vpop.f32.mrf.mxu0
        %v1576 = vpop.f32.mrf.mxu0
        %v1577 = vadd.f32 0.0, %v1576
        %v1578 = vpop.f32.mrf.mxu0
        %1579 = vmatprep.mubr.bf16.mxu0 0
        %1580 = vmatmul.mubr.bf16.gmra.mxu0 %v1517
        %v1581 = vpop.f32.mrf.mxu0
        %v1582 = vadd.f32 0.0, %v1581
        %v1583 = vpop.f32.mrf.mxu0
        %v1584 = vpop.f32.mrf.mxu0
        %v1585 = vadd.f32 0.0, %v1584
        %v1586 = vpop.f32.mrf.mxu0
        %1587 = vmatprep.mubr.bf16.mxu0 0
        %1588 = vmatmul.mubr.bf16.gmra.mxu0 %v1518
        %v1589 = vpop.f32.mrf.mxu0
        %v1590 = vadd.f32 0.0, %v1589
        %v1591 = vpop.f32.mrf.mxu0
        %v1592 = vpop.f32.mrf.mxu0
        %v1593 = vadd.f32 0.0, %v1592
        %v1594 = vpop.f32.mrf.mxu0
        %1595 = vmatprep.mubr.bf16.mxu0 0
        %1596 = vmatmul.mubr.bf16.gmra.mxu0 %v1519
        %v1597 = vpop.f32.mrf.mxu0
        %v1598 = vadd.f32 0.0, %v1597
        %v1599 = vpop.f32.mrf.mxu0
        %v1600 = vpop.f32.mrf.mxu0
        %v1601 = vadd.f32 0.0, %v1600
        %v1602 = vpop.f32.mrf.mxu0
        %1603 = vmatprep.mubr.bf16.mxu0 0
        %1604 = vmatmul.mubr.bf16.gmra.mxu0 %v1520
        %v1605 = vpop.f32.mrf.mxu0
        %v1606 = vadd.f32 0.0, %v1605
        %v1607 = vpop.f32.mrf.mxu0
        %v1608 = vpop.f32.mrf.mxu0
        %v1609 = vadd.f32 0.0, %v1608
        %v1610 = vpop.f32.mrf.mxu0
        %1611 = vmatprep.mubr.bf16.mxu0 0
        %1612 = vmatmul.mubr.bf16.gmra.mxu0 %v1521
        %v1613 = vpop.f32.mrf.mxu0
        %v1614 = vadd.f32 0.0, %v1613
        %v1615 = vpop.f32.mrf.mxu0
        %v1616 = vpop.f32.mrf.mxu0
        %v1617 = vadd.f32 0.0, %v1616
        %v1618 = vpop.f32.mrf.mxu0
        %1619 = vmatprep.mubr.bf16.mxu0 0
        %1620 = vmatmul.mubr.bf16.gmra.mxu0 %v1522
        %v1621 = vpop.f32.mrf.mxu0
        %v1622 = vadd.f32 0.0, %v1621
        %v1623 = vpop.f32.mrf.mxu0
        %v1624 = vpop.f32.mrf.mxu0
        %v1625 = vadd.f32 0.0, %v1624
        %v1626 = vpop.f32.mrf.mxu0
        %1627 = vdwg.mxu0
        %v1628 = vlaneseq
        %v1629 = vshrl.u32 %v1628, 7
        %v1630 = vadd.s32 %v1629, 8
        %v1631 = vadd.s32 %v1629, 16
        %v1632 = vadd.s32 %v1629, 24
        %v1633 = vadd.s32 %v1629, 32
        %v1634 = vadd.s32 %v1629, 40
        %v1635 = vadd.s32 %v1629, 48
        %v1636 = vadd.s32 %v1629, 56
        %v1637 = vadd.s32 %v1629, 64
        %v1638 = vadd.s32 %v1629, 72
        %v1639 = vadd.s32 %v1629, 80
        %v1640 = vadd.s32 %v1629, 88
        %v1641 = vadd.s32 %v1629, 96
        %v1642 = vadd.s32 %v1629, 104
        %v1643 = vadd.s32 %v1629, 112
        %v1644 = vadd.s32 %v1629, 120
        %v1645 = vlaneseq
        %v1646 = vand.u32 %v1645, 127
        %vm1647 = vcmp.le.s32.totalorder %v1646, %v1629
        %vm1648 = vcmp.le.s32.totalorder %v1646, %v1630
        %vm1649 = vcmp.le.s32.totalorder %v1646, %v1631
        %vm1650 = vcmp.le.s32.totalorder %v1646, %v1632
        %vm1651 = vcmp.le.s32.totalorder %v1646, %v1633
        %vm1652 = vcmp.le.s32.totalorder %v1646, %v1634
        %vm1653 = vcmp.le.s32.totalorder %v1646, %v1635
        %vm1654 = vcmp.le.s32.totalorder %v1646, %v1636
        %vm1655 = vcmp.le.s32.totalorder %v1646, %v1637
        %vm1656 = vcmp.le.s32.totalorder %v1646, %v1638
        %vm1657 = vcmp.le.s32.totalorder %v1646, %v1639
        %vm1658 = vcmp.le.s32.totalorder %v1646, %v1640
        %vm1659 = vcmp.le.s32.totalorder %v1646, %v1641
        %vm1660 = vcmp.le.s32.totalorder %v1646, %v1642
        %vm1661 = vcmp.le.s32.totalorder %v1646, %v1643
        %vm1662 = vcmp.le.s32.totalorder %v1646, %v1644
        %v1663 = vsel %vm1647, %v1566, -1e+30
        %v1664 = vsel %vm1648, %v1569, -1e+30
        %v1665 = vsel %vm1649, %v1574, -1e+30
        %v1666 = vsel %vm1650, %v1577, -1e+30
        %v1667 = vsel %vm1651, %v1582, -1e+30
        %v1668 = vsel %vm1652, %v1585, -1e+30
        %v1669 = vsel %vm1653, %v1590, -1e+30
        %v1670 = vsel %vm1654, %v1593, -1e+30
        %v1671 = vsel %vm1655, %v1598, -1e+30
        %v1672 = vsel %vm1656, %v1601, -1e+30
        %v1673 = vsel %vm1657, %v1606, -1e+30
        %v1674 = vsel %vm1658, %v1609, -1e+30
        %v1675 = vsel %vm1659, %v1614, -1e+30
        %v1676 = vsel %vm1660, %v1617, -1e+30
        %v1677 = vsel %vm1661, %v1622, -1e+30
        %v1678 = vsel %vm1662, %v1625, -1e+30
        %1679 = vmax.xlane.f32.xlu0 %v1663
        %v1680 = vpop.xlane.xlu0 %1679
        %1681 = vmax.xlane.f32.xlu0 %v1664
        %v1682 = vpop.xlane.xlu0 %1681
        %1683 = vmax.xlane.f32.xlu0 %v1665
        %v1684 = vpop.xlane.xlu0 %1683
        %1685 = vmax.xlane.f32.xlu0 %v1666
        %v1686 = vpop.xlane.xlu0 %1685
        %1687 = vmax.xlane.f32.xlu0 %v1667
        %v1688 = vpop.xlane.xlu0 %1687
        %1689 = vmax.xlane.f32.xlu0 %v1668
        %v1690 = vpop.xlane.xlu0 %1689
        %1691 = vmax.xlane.f32.xlu0 %v1669
        %v1692 = vpop.xlane.xlu0 %1691
        %1693 = vmax.xlane.f32.xlu0 %v1670
        %v1694 = vpop.xlane.xlu0 %1693
        %1695 = vmax.xlane.f32.xlu0 %v1671
        %v1696 = vpop.xlane.xlu0 %1695
        %1697 = vmax.xlane.f32.xlu0 %v1672
        %v1698 = vpop.xlane.xlu0 %1697
        %1699 = vmax.xlane.f32.xlu0 %v1673
        %v1700 = vpop.xlane.xlu0 %1699
        %1701 = vmax.xlane.f32.xlu0 %v1674
        %v1702 = vpop.xlane.xlu0 %1701
        %1703 = vmax.xlane.f32.xlu0 %v1675
        %v1704 = vpop.xlane.xlu0 %1703
        %1705 = vmax.xlane.f32.xlu0 %v1676
        %v1706 = vpop.xlane.xlu0 %1705
        %1707 = vmax.xlane.f32.xlu0 %v1677
        %v1708 = vpop.xlane.xlu0 %1707
        %1709 = vmax.xlane.f32.xlu0 %v1678
        %v1710 = vpop.xlane.xlu0 %1709
        %v1711 = vsub.f32 %v1663, %v1680
        %v1712 = vsub.f32 %v1664, %v1682
        %v1713 = vsub.f32 %v1665, %v1684
        %v1714 = vsub.f32 %v1666, %v1686
        %v1715 = vsub.f32 %v1667, %v1688
        %v1716 = vsub.f32 %v1668, %v1690
        %v1717 = vsub.f32 %v1669, %v1692
        %v1718 = vsub.f32 %v1670, %v1694
        %v1719 = vsub.f32 %v1671, %v1696
        %v1720 = vsub.f32 %v1672, %v1698
        %v1721 = vsub.f32 %v1673, %v1700
        %v1722 = vsub.f32 %v1674, %v1702
        %v1723 = vsub.f32 %v1675, %v1704
        %v1724 = vsub.f32 %v1676, %v1706
        %v1725 = vsub.f32 %v1677, %v1708
        %v1726 = vsub.f32 %v1678, %v1710
        %v1727 = vmul.f32 %v1711, 1.442695
        %v1728 = vpow.pop %v1727
        %v1729 = vmul.f32 %v1712, 1.442695
        %v1730 = vpow.pop %v1729
        %v1731 = vmul.f32 %v1713, 1.442695
        %v1732 = vpow.pop %v1731
        %v1733 = vmul.f32 %v1714, 1.442695
        %v1734 = vpow.pop %v1733
        %v1735 = vmul.f32 %v1715, 1.442695
        %v1736 = vpow.pop %v1735
        %v1737 = vmul.f32 %v1716, 1.442695
        %v1738 = vpow.pop %v1737
        %v1739 = vmul.f32 %v1717, 1.442695
        %v1740 = vpow.pop %v1739
        %v1741 = vmul.f32 %v1718, 1.442695
        %v1742 = vpow.pop %v1741
        %v1743 = vmul.f32 %v1719, 1.442695
        %v1744 = vpow.pop %v1743
        %v1745 = vmul.f32 %v1720, 1.442695
        %v1746 = vpow.pop %v1745
        %v1747 = vmul.f32 %v1721, 1.442695
        %v1748 = vpow.pop %v1747
        %v1749 = vmul.f32 %v1722, 1.442695
        %v1750 = vpow.pop %v1749
        %v1751 = vmul.f32 %v1723, 1.442695
        %v1752 = vpow.pop %v1751
        %v1753 = vmul.f32 %v1724, 1.442695
        %v1754 = vpow.pop %v1753
        %v1755 = vmul.f32 %v1725, 1.442695
        %v1756 = vpow.pop %v1755
        %v1757 = vmul.f32 %v1726, 1.442695
        %v1758 = vpow.pop %v1757
        %1759 = vadd.xlane.f32.xlu0 %v1728
        %v1760 = vpop.xlane.xlu0 %1759
        %1761 = vadd.xlane.f32.xlu0 %v1730
        %v1762 = vpop.xlane.xlu0 %1761
        %1763 = vadd.xlane.f32.xlu0 %v1732
        %v1764 = vpop.xlane.xlu0 %1763
        %1765 = vadd.xlane.f32.xlu0 %v1734
        %v1766 = vpop.xlane.xlu0 %1765
        %1767 = vadd.xlane.f32.xlu0 %v1736
        %v1768 = vpop.xlane.xlu0 %1767
        %1769 = vadd.xlane.f32.xlu0 %v1738
        %v1770 = vpop.xlane.xlu0 %1769
        %1771 = vadd.xlane.f32.xlu0 %v1740
        %v1772 = vpop.xlane.xlu0 %1771
        %1773 = vadd.xlane.f32.xlu0 %v1742
        %v1774 = vpop.xlane.xlu0 %1773
        %1775 = vadd.xlane.f32.xlu0 %v1744
        %v1776 = vpop.xlane.xlu0 %1775
        %1777 = vadd.xlane.f32.xlu0 %v1746
        %v1778 = vpop.xlane.xlu0 %1777
        %1779 = vadd.xlane.f32.xlu0 %v1748
        %v1780 = vpop.xlane.xlu0 %1779
        %1781 = vadd.xlane.f32.xlu0 %v1750
        %v1782 = vpop.xlane.xlu0 %1781
        %1783 = vadd.xlane.f32.xlu0 %v1752
        %v1784 = vpop.xlane.xlu0 %1783
        %1785 = vadd.xlane.f32.xlu0 %v1754
        %v1786 = vpop.xlane.xlu0 %1785
        %1787 = vadd.xlane.f32.xlu0 %v1756
        %v1788 = vpop.xlane.xlu0 %1787
        %1789 = vadd.xlane.f32.xlu0 %v1758
        %v1790 = vpop.xlane.xlu0 %1789
        %v1791 = vrcp.pop %v1760
        %v1792 = vrcp.pop %v1762
        %v1793 = vrcp.pop %v1764
        %v1794 = vrcp.pop %v1766
        %v1795 = vrcp.pop %v1768
        %v1796 = vrcp.pop %v1770
        %v1797 = vrcp.pop %v1772
        %v1798 = vrcp.pop %v1774
        %v1799 = vrcp.pop %v1776
        %v1800 = vrcp.pop %v1778
        %v1801 = vrcp.pop %v1780
        %v1802 = vrcp.pop %v1782
        %v1803 = vrcp.pop %v1784
        %v1804 = vrcp.pop %v1786
        %v1805 = vrcp.pop %v1788
        %v1806 = vrcp.pop %v1790
        %v1807 = vmul.f32 %v1728, %v1791
        %v1808 = vmul.f32 %v1730, %v1792
        %v1809 = vmul.f32 %v1732, %v1793
        %v1810 = vmul.f32 %v1734, %v1794
        %v1811 = vmul.f32 %v1736, %v1795
        %v1812 = vmul.f32 %v1738, %v1796
        %v1813 = vmul.f32 %v1740, %v1797
        %v1814 = vmul.f32 %v1742, %v1798
        %v1815 = vmul.f32 %v1744, %v1799
        %v1816 = vmul.f32 %v1746, %v1800
        %v1817 = vmul.f32 %v1748, %v1801
        %v1818 = vmul.f32 %v1750, %v1802
        %v1819 = vmul.f32 %v1752, %v1803
        %v1820 = vmul.f32 %v1754, %v1804
        %v1821 = vmul.f32 %v1756, %v1805
        %v1822 = vmul.f32 %v1758, %v1806
        %v1823 = vpack.c.bf16 %v1808, %v1807
        %v1824 = vpack.c.bf16 %v1810, %v1809
        %v1825 = vpack.c.bf16 %v1812, %v1811
        %v1826 = vpack.c.bf16 %v1814, %v1813
        %v1827 = vpack.c.bf16 %v1816, %v1815
        %v1828 = vpack.c.bf16 %v1818, %v1817
        %v1829 = vpack.c.bf16 %v1820, %v1819
        %v1830 = vpack.c.bf16 %v1822, %v1821
        %1831 = vmatprep.subr.bf16.mxu0 0
        %1832 = vmatpush1.bf16.msra.mxu0 %v1338
        %1833 = vmatprep.subr.bf16.mxu0 0
        %1834 = vmatpush1.bf16.msra.mxu0 %v1337
        %1835 = vmatprep.subr.bf16.mxu0 0
        %1836 = vmatpush1.bf16.msra.mxu0 %v1336
        %1837 = vmatprep.subr.bf16.mxu0 0
        %1838 = vmatpush1.bf16.msra.mxu0 %v1335
        %1839 = vmatprep.subr.bf16.mxu0 0
        %1840 = vmatpush1.bf16.msra.mxu0 %v1334
        %1841 = vmatprep.subr.bf16.mxu0 0
        %1842 = vmatpush1.bf16.msra.mxu0 %v1333
        %1843 = vmatprep.subr.bf16.mxu0 0
        %1844 = vmatpush1.bf16.msra.mxu0 %v1332
        %1845 = vmatprep.subr.bf16.mxu0 0
        %1846 = vmatpush1.bf16.msra.mxu0 %v1331
        %1847 = vmatprep.subr.bf16.mxu0 0
        %1848 = vmatpush2.bf16.msra.mxu0 0
        %1849 = vmatprep.subr.bf16.mxu0 0
        %1850 = vmatpush2.bf16.msra.mxu0 0
        %1851 = vmatprep.subr.bf16.mxu0 0
        %1852 = vmatpush2.bf16.msra.mxu0 0
        %1853 = vmatprep.subr.bf16.mxu0 0
        %1854 = vmatpush2.bf16.msra.mxu0 0
        %1855 = vmatprep.subr.bf16.mxu0 0
        %1856 = vmatpush2.bf16.msra.mxu0 0
        %1857 = vmatprep.subr.bf16.mxu0 0
        %1858 = vmatpush2.bf16.msra.mxu0 0
        %1859 = vmatprep.subr.bf16.mxu0 0
        %1860 = vmatpush2.bf16.msra.mxu0 0
        %1861 = vmatprep.subr.bf16.mxu0 0
        %1862 = vmatpush2.bf16.msra.mxu0 0
        %1863 = vmatprep.mubr.bf16.mxu0 0
        %1864 = vmatmul.mubr.bf16.gmra.mxu0 %v1823
        %v1865 = vpop.f32.mrf.mxu0
        %v1866 = vadd.f32 0.0, %v1865
        %v1867 = vpop.f32.mrf.mxu0
        %v1868 = vpop.f32.mrf.mxu0
        %v1869 = vadd.f32 0.0, %v1868
        %v1870 = vpop.f32.mrf.mxu0
        %1871 = vmatprep.mubr.bf16.mxu0 0
        %1872 = vmatmul.mubr.bf16.gmra.mxu0 %v1824
        %v1873 = vpop.f32.mrf.mxu0
        %v1874 = vadd.f32 0.0, %v1873
        %v1875 = vpop.f32.mrf.mxu0
        %v1876 = vpop.f32.mrf.mxu0
        %v1877 = vadd.f32 0.0, %v1876
        %v1878 = vpop.f32.mrf.mxu0
        %1879 = vmatprep.mubr.bf16.mxu0 0
        %1880 = vmatmul.mubr.bf16.gmra.mxu0 %v1825
        %v1881 = vpop.f32.mrf.mxu0
        %v1882 = vadd.f32 0.0, %v1881
        %v1883 = vpop.f32.mrf.mxu0
        %v1884 = vpop.f32.mrf.mxu0
        %v1885 = vadd.f32 0.0, %v1884
        %v1886 = vpop.f32.mrf.mxu0
        %1887 = vmatprep.mubr.bf16.mxu0 0
        %1888 = vmatmul.mubr.bf16.gmra.mxu0 %v1826
        %v1889 = vpop.f32.mrf.mxu0
        %v1890 = vadd.f32 0.0, %v1889
        %v1891 = vpop.f32.mrf.mxu0
        %v1892 = vpop.f32.mrf.mxu0
        %v1893 = vadd.f32 0.0, %v1892
        %v1894 = vpop.f32.mrf.mxu0
        %1895 = vmatprep.mubr.bf16.mxu0 0
        %1896 = vmatmul.mubr.bf16.gmra.mxu0 %v1827
        %v1897 = vpop.f32.mrf.mxu0
        %v1898 = vadd.f32 0.0, %v1897
        %v1899 = vpop.f32.mrf.mxu0
        %v1900 = vpop.f32.mrf.mxu0
        %v1901 = vadd.f32 0.0, %v1900
        %v1902 = vpop.f32.mrf.mxu0
        %1903 = vmatprep.mubr.bf16.mxu0 0
        %1904 = vmatmul.mubr.bf16.gmra.mxu0 %v1828
        %v1905 = vpop.f32.mrf.mxu0
        %v1906 = vadd.f32 0.0, %v1905
        %v1907 = vpop.f32.mrf.mxu0
        %v1908 = vpop.f32.mrf.mxu0
        %v1909 = vadd.f32 0.0, %v1908
        %v1910 = vpop.f32.mrf.mxu0
        %1911 = vmatprep.mubr.bf16.mxu0 0
        %1912 = vmatmul.mubr.bf16.gmra.mxu0 %v1829
        %v1913 = vpop.f32.mrf.mxu0
        %v1914 = vadd.f32 0.0, %v1913
        %v1915 = vpop.f32.mrf.mxu0
        %v1916 = vpop.f32.mrf.mxu0
        %v1917 = vadd.f32 0.0, %v1916
        %v1918 = vpop.f32.mrf.mxu0
        %1919 = vmatprep.mubr.bf16.mxu0 0
        %1920 = vmatmul.mubr.bf16.gmra.mxu0 %v1830
        %v1921 = vpop.f32.mrf.mxu0
        %v1922 = vadd.f32 0.0, %v1921
        %v1923 = vpop.f32.mrf.mxu0
        %v1924 = vpop.f32.mrf.mxu0
        %v1925 = vadd.f32 0.0, %v1924
        %v1926 = vpop.f32.mrf.mxu0
        %1927 = vdwg.mxu0
        %v1928 = vld [vmem:[#allocation2] sm:$0xff]
        %v1929 = vld [vmem:[#allocation2 + $0x8] sm:$0xff]
        %v1930 = vld [vmem:[#allocation2 + $0x10] sm:$0xff]
        %v1931 = vld [vmem:[#allocation2 + $0x18] sm:$0xff]
        %v1932 = vld [vmem:[#allocation2 + $0x20] sm:$0xff]
        %v1933 = vld [vmem:[#allocation2 + $0x28] sm:$0xff]
        %v1934 = vld [vmem:[#allocation2 + $0x30] sm:$0xff]
        %v1935 = vld [vmem:[#allocation2 + $0x38] sm:$0xff]
        %v1936 = vld [vmem:[#allocation2 + $0x40] sm:$0xff]
        %v1937 = vld [vmem:[#allocation2 + $0x48] sm:$0xff]
        %v1938 = vld [vmem:[#allocation2 + $0x50] sm:$0xff]
        %v1939 = vld [vmem:[#allocation2 + $0x58] sm:$0xff]
        %v1940 = vld [vmem:[#allocation2 + $0x60] sm:$0xff]
        %v1941 = vld [vmem:[#allocation2 + $0x68] sm:$0xff]
        %v1942 = vld [vmem:[#allocation2 + $0x70] sm:$0xff]
        %v1943 = vld [vmem:[#allocation2 + $0x78] sm:$0xff]
        %v1944 = vld [vmem:[#allocation2 + $0x80] sm:$0xff]
        %v1945 = vld [vmem:[#allocation2 + $0x88] sm:$0xff]
        %v1946 = vld [vmem:[#allocation2 + $0x90] sm:$0xff]
        %v1947 = vld [vmem:[#allocation2 + $0x98] sm:$0xff]
        %v1948 = vld [vmem:[#allocation2 + $0xa0] sm:$0xff]
        %v1949 = vld [vmem:[#allocation2 + $0xa8] sm:$0xff]
        %v1950 = vld [vmem:[#allocation2 + $0xb0] sm:$0xff]
        %v1951 = vld [vmem:[#allocation2 + $0xb8] sm:$0xff]
        %v1952 = vld [vmem:[#allocation2 + $0xc0] sm:$0xff]
        %v1953 = vld [vmem:[#allocation2 + $0xc8] sm:$0xff]
        %v1954 = vld [vmem:[#allocation2 + $0xd0] sm:$0xff]
        %v1955 = vld [vmem:[#allocation2 + $0xd8] sm:$0xff]
        %v1956 = vld [vmem:[#allocation2 + $0xe0] sm:$0xff]
        %v1957 = vld [vmem:[#allocation2 + $0xe8] sm:$0xff]
        %v1958 = vld [vmem:[#allocation2 + $0xf0] sm:$0xff]
        %v1959 = vld [vmem:[#allocation2 + $0xf8] sm:$0xff]
        %v1960 = vpack.c.bf16 %v1869, %v1866
        %v1961 = vpack.c.bf16 %v1877, %v1874
        %v1962 = vpack.c.bf16 %v1885, %v1882
        %v1963 = vpack.c.bf16 %v1893, %v1890
        %v1964 = vpack.c.bf16 %v1901, %v1898
        %v1965 = vpack.c.bf16 %v1909, %v1906
        %v1966 = vpack.c.bf16 %v1917, %v1914
        %v1967 = vpack.c.bf16 %v1925, %v1922
        %v1968 = vld [vmem:[%s431] sm:$0xff]
        %v1969 = vld [vmem:[%s431 + $0x8] sm:$0xff]
        %v1970 = vld [vmem:[%s431 + $0x10] sm:$0xff]
        %v1971 = vld [vmem:[%s431 + $0x18] sm:$0xff]
        %v1972 = vld [vmem:[%s431 + $0x20] sm:$0xff]
        %v1973 = vld [vmem:[%s431 + $0x28] sm:$0xff]
        %v1974 = vld [vmem:[%s431 + $0x30] sm:$0xff]
        %v1975 = vld [vmem:[%s431 + $0x38] sm:$0xff]
        %v1976 = vld [vmem:[%s431 + $0x40] sm:$0xff]
        %v1977 = vld [vmem:[%s431 + $0x48] sm:$0xff]
        %v1978 = vld [vmem:[%s431 + $0x50] sm:$0xff]
        %v1979 = vld [vmem:[%s431 + $0x58] sm:$0xff]
        %v1980 = vld [vmem:[%s431 + $0x60] sm:$0xff]
        %v1981 = vld [vmem:[%s431 + $0x68] sm:$0xff]
        %v1982 = vld [vmem:[%s431 + $0x70] sm:$0xff]
        %v1983 = vld [vmem:[%s431 + $0x78] sm:$0xff]
        %v2000 = vunpack.c.l.b16 %v1968
        %v2001 = vunpack.c.h.b16 %v1968
        %v2002 = vunpack.c.l.b16 %v1969
        %v2003 = vunpack.c.h.b16 %v1969
        %v2004 = vunpack.c.l.b16 %v1970
        %v2005 = vunpack.c.h.b16 %v1970
        %v2006 = vunpack.c.l.b16 %v1971
        %v2007 = vunpack.c.h.b16 %v1971
        %v2008 = vunpack.c.l.b16 %v1972
        %v2009 = vunpack.c.h.b16 %v1972
        %v2010 = vunpack.c.l.b16 %v1973
        %v2011 = vunpack.c.h.b16 %v1973
        %v2012 = vunpack.c.l.b16 %v1974
        %v2013 = vunpack.c.h.b16 %v1974
        %v2014 = vunpack.c.l.b16 %v1975
        %v2015 = vunpack.c.h.b16 %v1975
        %v2016 = vunpack.c.l.b16 %v1976
        %v2017 = vunpack.c.h.b16 %v1976
        %v2018 = vunpack.c.l.b16 %v1977
        %v2019 = vunpack.c.h.b16 %v1977
        %v2020 = vunpack.c.l.b16 %v1978
        %v2021 = vunpack.c.h.b16 %v1978
        %v2022 = vunpack.c.l.b16 %v1979
        %v2023 = vunpack.c.h.b16 %v1979
        %v2024 = vunpack.c.l.b16 %v1980
        %v2025 = vunpack.c.h.b16 %v1980
        %v2026 = vunpack.c.l.b16 %v1981
        %v2027 = vunpack.c.h.b16 %v1981
        %v2028 = vunpack.c.l.b16 %v1982
        %v2029 = vunpack.c.h.b16 %v1982
        %v2030 = vunpack.c.l.b16 %v1983
        %v2031 = vunpack.c.h.b16 %v1983
        %v2032 = vpack.c.b16 %v2002, %v2000
        %v2033 = vpack.c.b16 %v2003, %v2001
        %v2034 = vpack.c.b16 %v2006, %v2004
        %v2035 = vpack.c.b16 %v2007, %v2005
        %v2036 = vpack.c.b16 %v2010, %v2008
        %v2037 = vpack.c.b16 %v2011, %v2009
        %v2038 = vpack.c.b16 %v2014, %v2012
        %v2039 = vpack.c.b16 %v2015, %v2013
        %v2040 = vpack.c.b16 %v2018, %v2016
        %v2041 = vpack.c.b16 %v2019, %v2017
        %v2042 = vpack.c.b16 %v2022, %v2020
        %v2043 = vpack.c.b16 %v2023, %v2021
        %v2044 = vpack.c.b16 %v2026, %v2024
        %v2045 = vpack.c.b16 %v2027, %v2025
        %v2046 = vpack.c.b16 %v2030, %v2028
        %v2047 = vpack.c.b16 %v2031, %v2029
        %2064 = vmatprep.subr.bf16.mxu0 %v2047
        %2065 = vmatpush1.bf16.msra.mxu0 %v2046
        %2066 = vmatprep.subr.bf16.mxu0 %v2045
        %2067 = vmatpush1.bf16.msra.mxu0 %v2044
        %2068 = vmatprep.subr.bf16.mxu0 %v2043
        %2069 = vmatpush1.bf16.msra.mxu0 %v2042
        %2070 = vmatprep.subr.bf16.mxu0 %v2041
        %2071 = vmatpush1.bf16.msra.mxu0 %v2040
        %2072 = vmatprep.subr.bf16.mxu0 %v2039
        %2073 = vmatpush1.bf16.msra.mxu0 %v2038
        %2074 = vmatprep.subr.bf16.mxu0 %v2037
        %2075 = vmatpush1.bf16.msra.mxu0 %v2036
        %2076 = vmatprep.subr.bf16.mxu0 %v2035
        %2077 = vmatpush1.bf16.msra.mxu0 %v2034
        %2078 = vmatprep.subr.bf16.mxu0 %v2033
        %2079 = vmatpush1.bf16.msra.mxu0 %v2032
        %2080 = vmatprep.subr.bf16.mxu0 0
        %2081 = vmatpush2.bf16.msra.mxu0 0
        %2082 = vmatprep.subr.bf16.mxu0 0
        %2083 = vmatpush2.bf16.msra.mxu0 0
        %2084 = vmatprep.subr.bf16.mxu0 0
        %2085 = vmatpush2.bf16.msra.mxu0 0
        %2086 = vmatprep.subr.bf16.mxu0 0
        %2087 = vmatpush2.bf16.msra.mxu0 0
        %2088 = vmatprep.subr.bf16.mxu0 0
        %2089 = vmatpush2.bf16.msra.mxu0 0
        %2090 = vmatprep.subr.bf16.mxu0 0
        %2091 = vmatpush2.bf16.msra.mxu0 0
        %2092 = vmatprep.subr.bf16.mxu0 0
        %2093 = vmatpush2.bf16.msra.mxu0 0
        %2094 = vmatprep.subr.bf16.mxu0 0
        %2095 = vmatpush2.bf16.msra.mxu0 0
        %2096 = vmatprep.mubr.bf16.mxu0 0
        %2097 = vmatmul.mubr.bf16.gmra.mxu0 %v1960
        %v2098 = vpop.f32.mrf.mxu0
        %v2099 = vadd.f32 0.0, %v2098
        %v2100 = vpop.f32.mrf.mxu0
        %v2101 = vadd.f32 0.0, %v2100
        %v2102 = vpop.f32.mrf.mxu0
        %v2103 = vadd.f32 0.0, %v2102
        %v2104 = vpop.f32.mrf.mxu0
        %v2105 = vadd.f32 0.0, %v2104
        %2106 = vmatprep.mubr.bf16.mxu0 0
        %2107 = vmatmul.mubr.bf16.gmra.mxu0 %v1961
        %v2108 = vpop.f32.mrf.mxu0
        %v2109 = vadd.f32 0.0, %v2108
        %v2110 = vpop.f32.mrf.mxu0
        %v2111 = vadd.f32 0.0, %v2110
        %v2112 = vpop.f32.mrf.mxu0
        %v2113 = vadd.f32 0.0, %v2112
        %v2114 = vpop.f32.mrf.mxu0
        %v2115 = vadd.f32 0.0, %v2114
        %2116 = vmatprep.mubr.bf16.mxu0 0
        %2117 = vmatmul.mubr.bf16.gmra.mxu0 %v1962
        %v2118 = vpop.f32.mrf.mxu0
        %v2119 = vadd.f32 0.0, %v2118
        %v2120 = vpop.f32.mrf.mxu0
        %v2121 = vadd.f32 0.0, %v2120
        %v2122 = vpop.f32.mrf.mxu0
        %v2123 = vadd.f32 0.0, %v2122
        %v2124 = vpop.f32.mrf.mxu0
        %v2125 = vadd.f32 0.0, %v2124
        %2126 = vmatprep.mubr.bf16.mxu0 0
        %2127 = vmatmul.mubr.bf16.gmra.mxu0 %v1963
        %v2128 = vpop.f32.mrf.mxu0
        %v2129 = vadd.f32 0.0, %v2128
        %v2130 = vpop.f32.mrf.mxu0
        %v2131 = vadd.f32 0.0, %v2130
        %v2132 = vpop.f32.mrf.mxu0
        %v2133 = vadd.f32 0.0, %v2132
        %v2134 = vpop.f32.mrf.mxu0
        %v2135 = vadd.f32 0.0, %v2134
        %2136 = vmatprep.mubr.bf16.mxu0 0
        %2137 = vmatmul.mubr.bf16.gmra.mxu0 %v1964
        %v2138 = vpop.f32.mrf.mxu0
        %v2139 = vadd.f32 0.0, %v2138
        %v2140 = vpop.f32.mrf.mxu0
        %v2141 = vadd.f32 0.0, %v2140
        %v2142 = vpop.f32.mrf.mxu0
        %v2143 = vadd.f32 0.0, %v2142
        %v2144 = vpop.f32.mrf.mxu0
        %v2145 = vadd.f32 0.0, %v2144
        %2146 = vmatprep.mubr.bf16.mxu0 0
        %2147 = vmatmul.mubr.bf16.gmra.mxu0 %v1965
        %v2148 = vpop.f32.mrf.mxu0
        %v2149 = vadd.f32 0.0, %v2148
        %v2150 = vpop.f32.mrf.mxu0
        %v2151 = vadd.f32 0.0, %v2150
        %v2152 = vpop.f32.mrf.mxu0
        %v2153 = vadd.f32 0.0, %v2152
        %v2154 = vpop.f32.mrf.mxu0
        %v2155 = vadd.f32 0.0, %v2154
        %2156 = vmatprep.mubr.bf16.mxu0 0
        %2157 = vmatmul.mubr.bf16.gmra.mxu0 %v1966
        %v2158 = vpop.f32.mrf.mxu0
        %v2159 = vadd.f32 0.0, %v2158
        %v2160 = vpop.f32.mrf.mxu0
        %v2161 = vadd.f32 0.0, %v2160
        %v2162 = vpop.f32.mrf.mxu0
        %v2163 = vadd.f32 0.0, %v2162
        %v2164 = vpop.f32.mrf.mxu0
        %v2165 = vadd.f32 0.0, %v2164
        %2166 = vmatprep.mubr.bf16.mxu0 0
        %2167 = vmatmul.mubr.bf16.gmra.mxu0 %v1967
        %v2168 = vpop.f32.mrf.mxu0
        %v2169 = vadd.f32 0.0, %v2168
        %v2170 = vpop.f32.mrf.mxu0
        %v2171 = vadd.f32 0.0, %v2170
        %v2172 = vpop.f32.mrf.mxu0
        %v2173 = vadd.f32 0.0, %v2172
        %v2174 = vpop.f32.mrf.mxu0
        %v2175 = vadd.f32 0.0, %v2174
        %2176 = vdwg.mxu0
        %v2177 = vadd.f32 %v1928, %v2099
        %v2178 = vadd.f32 %v1929, %v2101
        %v2179 = vadd.f32 %v1930, %v2103
        %v2180 = vadd.f32 %v1931, %v2105
        %v2181 = vadd.f32 %v1932, %v2109
        %v2182 = vadd.f32 %v1933, %v2111
        %v2183 = vadd.f32 %v1934, %v2113
        %v2184 = vadd.f32 %v1935, %v2115
        %v2185 = vadd.f32 %v1936, %v2119
        %v2186 = vadd.f32 %v1937, %v2121
        %v2187 = vadd.f32 %v1938, %v2123
        %v2188 = vadd.f32 %v1939, %v2125
        %v2189 = vadd.f32 %v1940, %v2129
        %v2190 = vadd.f32 %v1941, %v2131
        %v2191 = vadd.f32 %v1942, %v2133
        %v2192 = vadd.f32 %v1943, %v2135
        %v2193 = vadd.f32 %v1944, %v2139
        %v2194 = vadd.f32 %v1945, %v2141
        %v2195 = vadd.f32 %v1946, %v2143
        %v2196 = vadd.f32 %v1947, %v2145
        %v2197 = vadd.f32 %v1948, %v2149
        %v2198 = vadd.f32 %v1949, %v2151
        %v2199 = vadd.f32 %v1950, %v2153
        %v2200 = vadd.f32 %v1951, %v2155
        %v2201 = vadd.f32 %v1952, %v2159
        %v2202 = vadd.f32 %v1953, %v2161
        %v2203 = vadd.f32 %v1954, %v2163
        %v2204 = vadd.f32 %v1955, %v2165
        %v2205 = vadd.f32 %v1956, %v2169
        %v2206 = vadd.f32 %v1957, %v2171
        %v2207 = vadd.f32 %v1958, %v2173
        %v2208 = vadd.f32 %v1959, %v2175
        %2209 = vst [vmem:[#allocation2] sm:$0xff] %v2177
        %2210 = vst [vmem:[#allocation2 + $0x8] sm:$0xff] %v2178
        %2211 = vst [vmem:[#allocation2 + $0x10] sm:$0xff] %v2179
        %2212 = vst [vmem:[#allocation2 + $0x18] sm:$0xff] %v2180
        %2213 = vst [vmem:[#allocation2 + $0x20] sm:$0xff] %v2181
        %2214 = vst [vmem:[#allocation2 + $0x28] sm:$0xff] %v2182
        %2215 = vst [vmem:[#allocation2 + $0x30] sm:$0xff] %v2183
        %2216 = vst [vmem:[#allocation2 + $0x38] sm:$0xff] %v2184
        %2217 = vst [vmem:[#allocation2 + $0x40] sm:$0xff] %v2185
        %2218 = vst [vmem:[#allocation2 + $0x48] sm:$0xff] %v2186
        %2219 = vst [vmem:[#allocation2 + $0x50] sm:$0xff] %v2187
        %2220 = vst [vmem:[#allocation2 + $0x58] sm:$0xff] %v2188
        %2221 = vst [vmem:[#allocation2 + $0x60] sm:$0xff] %v2189
        %2222 = vst [vmem:[#allocation2 + $0x68] sm:$0xff] %v2190
        %2223 = vst [vmem:[#allocation2 + $0x70] sm:$0xff] %v2191
        %2224 = vst [vmem:[#allocation2 + $0x78] sm:$0xff] %v2192
        %2225 = vst [vmem:[#allocation2 + $0x80] sm:$0xff] %v2193
        %2226 = vst [vmem:[#allocation2 + $0x88] sm:$0xff] %v2194
        %2227 = vst [vmem:[#allocation2 + $0x90] sm:$0xff] %v2195
        %2228 = vst [vmem:[#allocation2 + $0x98] sm:$0xff] %v2196
        %2229 = vst [vmem:[#allocation2 + $0xa0] sm:$0xff] %v2197
        %2230 = vst [vmem:[#allocation2 + $0xa8] sm:$0xff] %v2198
        %2231 = vst [vmem:[#allocation2 + $0xb0] sm:$0xff] %v2199
        %2232 = vst [vmem:[#allocation2 + $0xb8] sm:$0xff] %v2200
        %2233 = vst [vmem:[#allocation2 + $0xc0] sm:$0xff] %v2201
        %2234 = vst [vmem:[#allocation2 + $0xc8] sm:$0xff] %v2202
        %2235 = vst [vmem:[#allocation2 + $0xd0] sm:$0xff] %v2203
        %2236 = vst [vmem:[#allocation2 + $0xd8] sm:$0xff] %v2204
        %2237 = vst [vmem:[#allocation2 + $0xe0] sm:$0xff] %v2205
        %2238 = vst [vmem:[#allocation2 + $0xe8] sm:$0xff] %v2206
        %2239 = vst [vmem:[#allocation2 + $0xf0] sm:$0xff] %v2207
        %2240 = vst [vmem:[#allocation2 + $0xf8] sm:$0xff] %v2208
        %p2241 = scmp.eq.s32.totalorder %s36, 1
        // Predicated region
        $region81: #{tpu_custom_call.1} parent=47 // pred_check
          %p2242 = pneg %p2241
        $region82: #{tpu_custom_call.1} parent=47 // pred_check_branch
          %2244 = sbr.rel (%p2242) target = $region84
        $region83: #{tpu_custom_call.1} parent=47 // pred_region
          %v2245 = vld [vmem:[#allocation2] sm:$0xff]
          %v2246 = vld [vmem:[#allocation2 + $0x8] sm:$0xff]
          %v2247 = vld [vmem:[#allocation2 + $0x10] sm:$0xff]
          %v2248 = vld [vmem:[#allocation2 + $0x18] sm:$0xff]
          %v2249 = vld [vmem:[#allocation2 + $0x20] sm:$0xff]
          %v2250 = vld [vmem:[#allocation2 + $0x28] sm:$0xff]
          %v2251 = vld [vmem:[#allocation2 + $0x30] sm:$0xff]
          %v2252 = vld [vmem:[#allocation2 + $0x38] sm:$0xff]
          %v2253 = vld [vmem:[#allocation2 + $0x40] sm:$0xff]
          %v2254 = vld [vmem:[#allocation2 + $0x48] sm:$0xff]
          %v2255 = vld [vmem:[#allocation2 + $0x50] sm:$0xff]
          %v2256 = vld [vmem:[#allocation2 + $0x58] sm:$0xff]
          %v2257 = vld [vmem:[#allocation2 + $0x60] sm:$0xff]
          %v2258 = vld [vmem:[#allocation2 + $0x68] sm:$0xff]
          %v2259 = vld [vmem:[#allocation2 + $0x70] sm:$0xff]
          %v2260 = vld [vmem:[#allocation2 + $0x78] sm:$0xff]
          %v2261 = vld [vmem:[#allocation2 + $0x80] sm:$0xff]
          %v2262 = vld [vmem:[#allocation2 + $0x88] sm:$0xff]
          %v2263 = vld [vmem:[#allocation2 + $0x90] sm:$0xff]
          %v2264 = vld [vmem:[#allocation2 + $0x98] sm:$0xff]
          %v2265 = vld [vmem:[#allocation2 + $0xa0] sm:$0xff]
          %v2266 = vld [vmem:[#allocation2 + $0xa8] sm:$0xff]
          %v2267 = vld [vmem:[#allocation2 + $0xb0] sm:$0xff]
          %v2268 = vld [vmem:[#allocation2 + $0xb8] sm:$0xff]
          %v2269 = vld [vmem:[#allocation2 + $0xc0] sm:$0xff]
          %v2270 = vld [vmem:[#allocation2 + $0xc8] sm:$0xff]
          %v2271 = vld [vmem:[#allocation2 + $0xd0] sm:$0xff]
          %v2272 = vld [vmem:[#allocation2 + $0xd8] sm:$0xff]
          %v2273 = vld [vmem:[#allocation2 + $0xe0] sm:$0xff]
          %v2274 = vld [vmem:[#allocation2 + $0xe8] sm:$0xff]
          %v2275 = vld [vmem:[#allocation2 + $0xf0] sm:$0xff]
          %v2276 = vld [vmem:[#allocation2 + $0xf8] sm:$0xff]
          %v2277 = vpack.c.bf16 %v2247, %v2245
          %v2278 = vpack.c.bf16 %v2248, %v2246
          %v2279 = vpack.c.bf16 %v2251, %v2249
          %v2280 = vpack.c.bf16 %v2252, %v2250
          %v2281 = vpack.c.bf16 %v2255, %v2253
          %v2282 = vpack.c.bf16 %v2256, %v2254
          %v2283 = vpack.c.bf16 %v2259, %v2257
          %v2284 = vpack.c.bf16 %v2260, %v2258
          %v2285 = vpack.c.bf16 %v2263, %v2261
          %v2286 = vpack.c.bf16 %v2264, %v2262
          %v2287 = vpack.c.bf16 %v2267, %v2265
          %v2288 = vpack.c.bf16 %v2268, %v2266
          %v2289 = vpack.c.bf16 %v2271, %v2269
          %v2290 = vpack.c.bf16 %v2272, %v2270
          %v2291 = vpack.c.bf16 %v2275, %v2273
          %v2292 = vpack.c.bf16 %v2276, %v2274
          %v2309 = vunpack.c.l.b16 %v2277
          %v2310 = vunpack.c.l.b16 %v2278
          %v2311 = vunpack.c.h.b16 %v2277
          %v2312 = vunpack.c.h.b16 %v2278
          %v2313 = vunpack.c.l.b16 %v2279
          %v2314 = vunpack.c.l.b16 %v2280
          %v2315 = vunpack.c.h.b16 %v2279
          %v2316 = vunpack.c.h.b16 %v2280
          %v2317 = vunpack.c.l.b16 %v2281
          %v2318 = vunpack.c.l.b16 %v2282
          %v2319 = vunpack.c.h.b16 %v2281
          %v2320 = vunpack.c.h.b16 %v2282
          %v2321 = vunpack.c.l.b16 %v2283
          %v2322 = vunpack.c.l.b16 %v2284
          %v2323 = vunpack.c.h.b16 %v2283
          %v2324 = vunpack.c.h.b16 %v2284
          %v2325 = vunpack.c.l.b16 %v2285
          %v2326 = vunpack.c.l.b16 %v2286
          %v2327 = vunpack.c.h.b16 %v2285
          %v2328 = vunpack.c.h.b16 %v2286
          %v2329 = vunpack.c.l.b16 %v2287
          %v2330 = vunpack.c.l.b16 %v2288
          %v2331 = vunpack.c.h.b16 %v2287
          %v2332 = vunpack.c.h.b16 %v2288
          %v2333 = vunpack.c.l.b16 %v2289
          %v2334 = vunpack.c.l.b16 %v2290
          %v2335 = vunpack.c.h.b16 %v2289
          %v2336 = vunpack.c.h.b16 %v2290
          %v2337 = vunpack.c.l.b16 %v2291
          %v2338 = vunpack.c.l.b16 %v2292
          %v2339 = vunpack.c.h.b16 %v2291
          %v2340 = vunpack.c.h.b16 %v2292
          %v2341 = vpack.c.b16 %v2310, %v2309
          %v2342 = vpack.c.b16 %v2312, %v2311
          %v2343 = vpack.c.b16 %v2314, %v2313
          %v2344 = vpack.c.b16 %v2316, %v2315
          %v2345 = vpack.c.b16 %v2318, %v2317
          %v2346 = vpack.c.b16 %v2320, %v2319
          %v2347 = vpack.c.b16 %v2322, %v2321
          %v2348 = vpack.c.b16 %v2324, %v2323
          %v2349 = vpack.c.b16 %v2326, %v2325
          %v2350 = vpack.c.b16 %v2328, %v2327
          %v2351 = vpack.c.b16 %v2330, %v2329
          %v2352 = vpack.c.b16 %v2332, %v2331
          %v2353 = vpack.c.b16 %v2334, %v2333
          %v2354 = vpack.c.b16 %v2336, %v2335
          %v2355 = vpack.c.b16 %v2338, %v2337
          %v2356 = vpack.c.b16 %v2340, %v2339
          %2373 = vst [vmem:[%s489] sm:$0xff] %v2341
          %2374 = vst [vmem:[%s489 + $0x8] sm:$0xff] %v2342
          %2375 = vst [vmem:[%s489 + $0x10] sm:$0xff] %v2343
          %2376 = vst [vmem:[%s489 + $0x18] sm:$0xff] %v2344
          %2377 = vst [vmem:[%s489 + $0x20] sm:$0xff] %v2345
          %2378 = vst [vmem:[%s489 + $0x28] sm:$0xff] %v2346
          %2379 = vst [vmem:[%s489 + $0x30] sm:$0xff] %v2347
          %2380 = vst [vmem:[%s489 + $0x38] sm:$0xff] %v2348
          %2381 = vst [vmem:[%s489 + $0x40] sm:$0xff] %v2349
          %2382 = vst [vmem:[%s489 + $0x48] sm:$0xff] %v2350
          %2383 = vst [vmem:[%s489 + $0x50] sm:$0xff] %v2351
          %2384 = vst [vmem:[%s489 + $0x58] sm:$0xff] %v2352
          %2385 = vst [vmem:[%s489 + $0x60] sm:$0xff] %v2353
          %2386 = vst [vmem:[%s489 + $0x68] sm:$0xff] %v2354
          %2387 = vst [vmem:[%s489 + $0x70] sm:$0xff] %v2355
          %2388 = vst [vmem:[%s489 + $0x78] sm:$0xff] %v2356
        $region84: #{tpu_custom_call.1} parent=47 // pred_fallthru
          _
        %s2389 = sand.u32 %s223, 1
        %s2390 = scalar_lea.sflag [#allocation5], %s2389
        %s2391 = sand.u32 %s223, 1
        %s2392 = smul.addr %s2391, 128
        %s2393 = scalar_lea.vmem [#allocation15], %s2392
        // Predicated region
        $region85: #{tpu_custom_call.1} parent=47 // pred_check
          %p2394 = pneg %p233
        $region86: #{tpu_custom_call.1} parent=47 // pred_check_branch
          %2396 = sbr.rel (%p2394) target = $region88
        $region87: #{tpu_custom_call.1} parent=47 // pred_region
          %s2398 = ssub.s32 2048, 2048
          %2399 = vsyncadd %s2390, %s2398
          %s2400 = smul.addr %s35, 32
          %s2401 = smul.addr %s2400, 64
          %s2402 = scalar_lea.hbm %s7, %s2401
          %s2403 = sshll.u32 %s2393, 4
          %s2404 = int_to_ptr.vmem [resolvable:$true] %s2403
          %2409 = dma.vmem_to_hbm [thread:$0]  %s2404, 2048, %s2402, %s2390, 128, 128, 8
        $region88: #{tpu_custom_call.1} parent=47 // pred_fallthru
          _
      $region48: #{tpu_custom_call.1} parent=5 // pred_fallthru
        _
      %p2410 = scmp.le.s32.totalorder 2, %s26
      // Predicated region
      $region89: #{tpu_custom_call.1} parent=5 // pred_check
        %p2411 = pneg %p2410
      $region90: #{tpu_custom_call.1} parent=5 // pred_check_branch
        %2413 = sbr.rel (%p2411) target = $region92
      $region91: #{tpu_custom_call.1} parent=5 // pred_region
        %s2414 = ssub.s32 %s26, 2
        // Predicated region
        $region93: #{tpu_custom_call.1} parent=91 // pred_check
          %p2415 = pneg %p239
        $region94: #{tpu_custom_call.1} parent=91 // pred_check_branch
          %2417 = sbr.rel (%p2415) target = $region96
        $region95: #{tpu_custom_call.1} parent=91 // pred_region
          %s2418 = sand.u32 %s224, 1
          %s2419 = scalar_lea.sflag [#allocation5], %s2418
          %s2420 = sand.u32 %s224, 1
          %s2421 = smul.addr %s2420, 128
          %s2422 = scalar_lea.vmem [#allocation15], %s2421
          %2423 = dma.done %s2419, 2048
        $region96: #{tpu_custom_call.1} parent=91 // pred_fallthru
          _
      $region92: #{tpu_custom_call.1} parent=5 // pred_fallthru
        _
    $region6: #{tpu_custom_call.1} parent=1 // loop_footer
      %s30 = sadd.s32 1, %s26
    $region7: #{tpu_custom_call.1} parent=1 // loop_footer_branch
      %25 = sbr.rel target = $region3
    $region8: #{tpu_custom_call.1} parent=1 // loop_exit
      _
    %2424 = vsyncpa [#allocation4], 1
    %s2425 = scalar_lea.sflag [#allocation4], 1
    %2426 = vsyncpa %s2425, 1
    %2427 = vsyncpa [#allocation7], 1
    %s2428 = scalar_lea.sflag [#allocation7], 1
    %2429 = vsyncpa %s2428, 1
    %2430 = vsyncpa [#allocation10], 1
    %s2431 = scalar_lea.sflag [#allocation10], 1
    %2432 = vsyncpa %s2431, 1
    %2433 = vsyncpa [#allocation13], 1
    %2434 = vsyncpa [#allocation5], 1
    %s2435 = scalar_lea.sflag [#allocation5], 1
    %2436 = vsyncpa %s2435, 1

</llo_original>
